<compile_context>
chip_gen: v7x
topology: tpu7x:2x2x1
jax: 0.10.0
libtpu: 0.0.40
codegen_flags: <defaults>
</compile_context>

<pallas_src>
import functools

import jax
import jax.numpy as jnp
from jax.experimental import pallas as pl
from jax.experimental.pallas import tpu as pltpu


# ---------------------------------------------------------------------------
# DDPM schedules (plain JAX glue — matches ddpm_schedules in the PyTorch code)
# ---------------------------------------------------------------------------
def ddpm_schedules(beta1: float, beta2: float, T: int):
    assert beta1 < beta2 < 1.0, "beta1 and beta2 must be in (0, 1)"
    beta_t = (beta2 - beta1) * jnp.arange(0, T + 1, dtype=jnp.float32) / T + beta1
    sqrt_beta_t = jnp.sqrt(beta_t)
    alpha_t = 1.0 - beta_t
    log_alpha_t = jnp.log(alpha_t)
    alphabar_t = jnp.exp(jnp.cumsum(log_alpha_t))
    sqrtab = jnp.sqrt(alphabar_t)
    oneover_sqrta = 1.0 / jnp.sqrt(alpha_t)
    sqrtmab = jnp.sqrt(1.0 - alphabar_t)
    mab_over_sqrtmab_inv = (1.0 - alpha_t) / sqrtmab
    return {
        "alpha_t": alpha_t,
        "oneover_sqrta": oneover_sqrta,
        "sqrt_beta_t": sqrt_beta_t,
        "alphabar_t": alphabar_t,
        "sqrtab": sqrtab,
        "sqrtmab": sqrtmab,
        "mab_over_sqrtmab": mab_over_sqrtmab_inv,
    }


def pack_schedule_table(sched, n_T: int):
    """Pack sqrtab / sqrtmab into one lane-dense (8, TPAD) f32 table.

    Row 0 = sqrtab, row 1 = sqrtmab; lanes index the time step t (zero padded
    to a multiple of 128).  Built once outside the hot path; the kernel
    gathers per-row values with an exact-f32 mask + lane reduce.
    """
    t1 = n_T + 1
    tpad = pl.cdiv(t1, 128) * 128
    table = jnp.zeros((8, tpad), jnp.float32)
    table = table.at[0, :t1].set(sched["sqrtab"].astype(jnp.float32))
    table = table.at[1, :t1].set(sched["sqrtmab"].astype(jnp.float32))
    return table


# ---------------------------------------------------------------------------
# Pallas kernel: forward-diffusion mix + schedule gather + MLP + loss / stats
# ---------------------------------------------------------------------------
def _ddpm_fwd_kernel(
    x_ref,      # (TB, D)   f32  batch tile of x
    eps_ref,    # (TB, D)   f32  batch tile of eps
    ts_ref,     # (TB, 1)   i32  batch tile of _ts
    table_ref,  # (8, TPAD) f32  row0=sqrtab, row1=sqrtmab (zero padded)
    w1_ref,     # (D, H)    f32
    b1_ref,     # (1, H)    f32
    wt_ref,     # (1, H)    f32  time-embedding weight
    w2_ref,     # (H, D)    f32
    b2_ref,     # (1, D)    f32
    out_ref,    # (8,)      f32  SMEM: [loss, eps_sum, eps_sq, pred_sum, pred_sq, 0,0,0]
    *,
    n_T: int,
    n_elem: float,
):
    i = pl.program_id(0)

    @pl.when(i == 0)
    def _init():
        for k in range(8):
            out_ref[k] = jnp.float32(0.0)

    x = x_ref[...]
    eps = eps_ref[...]
    ts = ts_ref[...]                                     # (TB, 1) int32
    tb = x.shape[0]
    tpad = table_ref.shape[1]

    # In-kernel gather of sqrtab[_ts] / sqrtmab[_ts]: per-row one-hot mask
    # times the lane-dense table row, then a lane reduce.  Exactly one f32
    # value is selected per row, so the gather is bit-exact (no MXU rounding).
    lane_ids = jax.lax.broadcasted_iota(jnp.int32, (tb, tpad), 1)
    hit = (lane_ids == ts).astype(jnp.float32)           # (TB, TPAD)
    sa = jnp.sum(hit * table_ref[0:1, :], axis=-1, keepdims=True)  # sqrtab[_ts]  (TB,1)
    sb = jnp.sum(hit * table_ref[1:2, :], axis=-1, keepdims=True)  # sqrtmab[_ts] (TB,1)
    t = ts.astype(jnp.float32) * jnp.float32(1.0 / n_T)  # _ts / n_T    (TB, 1)

    # Forward diffusion: x_t = sqrtab[_ts] * x + sqrtmab[_ts] * eps  (f32 VPU)
    x_t = sa * x + sb * eps

    # eps_model (2-layer MLP with additive time embedding).
    # bf16 operands feed the MXU; accumulation and elementwise stay f32.
    h = jnp.dot(
        x_t.astype(jnp.bfloat16), w1_ref[...].astype(jnp.bfloat16),
        preferred_element_type=jnp.float32,
    )
    h = h + b1_ref[...] + t * wt_ref[...]
    h = jnp.maximum(h, 0.0)
    eps_pred = jnp.dot(
        h.astype(jnp.bfloat16), w2_ref[...].astype(jnp.bfloat16),
        preferred_element_type=jnp.float32,
    ) + b2_ref[...]

    # Partial sums for this batch tile, accumulated in the SMEM output.
    diff = eps - eps_pred
    out_ref[0] += jnp.sum(diff * diff)
    out_ref[1] += jnp.sum(eps)
    out_ref[2] += jnp.sum(eps * eps)
    out_ref[3] += jnp.sum(eps_pred)
    out_ref[4] += jnp.sum(eps_pred * eps_pred)

    @pl.when(i == pl.num_programs(0) - 1)
    def _finalize():
        # criterion = nn.MSELoss(): mean over all B*D elements.
        out_ref[0] = out_ref[0] * jnp.float32(1.0 / n_elem)


# ---------------------------------------------------------------------------
# Wrapper: mirrors DDPM.forward
# ---------------------------------------------------------------------------
@functools.partial(jax.jit, static_argnames=("n_T",))
def ddpm_forward(x, key, params, table, n_T):
    """Returns (loss, (eps_sum, eps_sq_sum), (eps_pred_sum, eps_pred_sq_sum))."""
    B, D = x.shape
    H = params["w1"].shape[1]
    tpad = table.shape[1]

    k_ts, k_eps = jax.random.split(key)
    # _ts = torch.randint(1, self.n_T, (B,))  — exclusive high, exactly as in
    # the given PyTorch spec (samples 1 .. n_T-1).
    _ts = jax.random.randint(k_ts, (B, 1), 1, n_T, dtype=jnp.int32)
    # eps = torch.randn_like(x)
    eps = jax.random.normal(k_eps, x.shape, dtype=x.dtype)

    tb = B if B <= 128 else 128
    assert B % tb == 0, "batch must be a multiple of the 128-row batch tile"
    grid = (B // tb,)

    kernel = functools.partial(_ddpm_fwd_kernel, n_T=n_T, n_elem=float(B * D))

    out = pl.pallas_call(
        kernel,
        out_shape=jax.ShapeDtypeStruct((8,), jnp.float32),
        grid=grid,
        in_specs=[
            pl.BlockSpec((tb, D), lambda i: (i, 0)),       # x (batch tiled)
            pl.BlockSpec((tb, D), lambda i: (i, 0)),       # eps (batch tiled)
            pl.BlockSpec((tb, 1), lambda i: (i, 0)),       # _ts (batch tiled)
            pl.BlockSpec((8, tpad), lambda i: (0, 0)),     # schedule table (resident)
            pl.BlockSpec((D, H), lambda i: (0, 0)),        # w1 (resident)
            pl.BlockSpec((1, H), lambda i: (0, 0)),        # b1
            pl.BlockSpec((1, H), lambda i: (0, 0)),        # wt
            pl.BlockSpec((H, D), lambda i: (0, 0)),        # w2
            pl.BlockSpec((1, D), lambda i: (0, 0)),        # b2
        ],
        # Single packed scalar output in SMEM (accumulator across batch tiles).
        out_specs=pl.BlockSpec(memory_space=pltpu.MemorySpace.SMEM),
        compiler_params=pltpu.CompilerParams(
            # Batch axis carries the scalar accumulator => must be "arbitrary".
            dimension_semantics=("arbitrary",),
        ),
    )(
        x, eps, _ts, table,
        params["w1"], params["b1"], params["wt"], params["w2"], params["b2"],
    )

    loss = out[0]
    return loss, (out[1], out[2]), (out[3], out[4])


# ---------------------------------------------------------------------------
# Deterministic parameter init for the synthetic eps_model
# ---------------------------------------------------------------------------
def init_eps_model_params(key, D, H):
    k1, k2, k3 = jax.random.split(key, 3)
    return {
        "w1": jax.random.normal(k1, (D, H), jnp.float32) / jnp.sqrt(D),
        "b1": jnp.zeros((1, H), jnp.float32),
        "wt": jax.random.normal(k2, (1, H), jnp.float32),
        "w2": jax.random.normal(k3, (H, D), jnp.float32) / jnp.sqrt(H),
        "b2": jnp.zeros((1, D), jnp.float32),
    }


if __name__ == "__main__":
    # Small 1-D diffusion problem; batch scaled to 256 rows (two 128-row tiles)
    # so the kernel exercises the batch-grid accumulator path.
    B, D, H = 256, 16, 32
    n_T = 400
    betas = (1e-4, 0.02)

    root = jax.random.PRNGKey(0)
    k_params, k_x, k_fwd = jax.random.split(root, 3)

    params = init_eps_model_params(k_params, D, H)
    sched = ddpm_schedules(betas[0], betas[1], n_T)
    table = pack_schedule_table(sched, n_T)            # built once, outside the hot path
    x = jax.random.normal(k_x, (B, D), dtype=jnp.float32)

    # TODO(synk): eps_model is an arbitrary nn.Module in the reference; a fixed
    # 2-layer MLP with additive time embedding is substituted deterministically.
    loss, (e_sum, e_sq), (p_sum, p_sq) = ddpm_forward(x, k_fwd, params, table, n_T)
    jax.block_until_ready((loss, e_sum, e_sq, p_sum, p_sq))

    print("KERNEL_OK")
</pallas_src>

<mosaic_0001>
module attributes {stable_mosaic.version = 11 : i64} {
  func.func @_ddpm_fwd_kernel(%arg0: i32, %arg1: memref<128x16xf32, #tpu.memory_space<vmem>>, %arg2: memref<128x16xf32, #tpu.memory_space<vmem>>, %arg3: memref<128x1xi32, #tpu.memory_space<vmem>>, %arg4: memref<8x512xf32, #tpu.memory_space<vmem>>, %arg5: memref<16x32xf32, #tpu.memory_space<vmem>>, %arg6: memref<1x32xf32, #tpu.memory_space<vmem>>, %arg7: memref<1x32xf32, #tpu.memory_space<vmem>>, %arg8: memref<32x16xf32, #tpu.memory_space<vmem>>, %arg9: memref<1x16xf32, #tpu.memory_space<vmem>>, %arg10: memref<8xf32, #tpu.memory_space<smem>>) attributes {dimension_semantics = [#tpu.dimension_semantics<arbitrary>], iteration_bounds = array<i64: 2>, scalar_prefetch = 0 : i64, scratch_operands = 0 : i64, tpu.core_type = #tpu.core_type<tc>, window_params = [{transform_indices = @transform_0, window_bounds = array<i64: 128, 16>}, {transform_indices = @transform_1, window_bounds = array<i64: 128, 16>}, {transform_indices = @transform_2, window_bounds = array<i64: 128, 1>}, {pipeline_mode = #tpu.pipeline_mode<synchronous>, transform_indices = @transform_3, window_bounds = array<i64: 8, 512>}, {pipeline_mode = #tpu.pipeline_mode<synchronous>, transform_indices = @transform_4, window_bounds = array<i64: 16, 32>}, {pipeline_mode = #tpu.pipeline_mode<synchronous>, transform_indices = @transform_5, window_bounds = array<i64: 1, 32>}, {pipeline_mode = #tpu.pipeline_mode<synchronous>, transform_indices = @transform_6, window_bounds = array<i64: 1, 32>}, {pipeline_mode = #tpu.pipeline_mode<synchronous>, transform_indices = @transform_7, window_bounds = array<i64: 32, 16>}, {pipeline_mode = #tpu.pipeline_mode<synchronous>, transform_indices = @transform_8, window_bounds = array<i64: 1, 16>}, {transform_indices = @transform_9, window_bounds = array<i64: 8>}]} {
    %c0_i32 = arith.constant 0 : i32
    %0 = arith.cmpi eq, %arg0, %c0_i32 : i32
    %1 = arith.extui %0 : i1 to i32
    %c0_i32_0 = arith.constant 0 : i32
    %2 = arith.cmpi ne, %1, %c0_i32_0 : i32
    scf.if %2 {
      %cst_37 = arith.constant 0.000000e+00 : f32
      %c0_38 = arith.constant 0 : index
      %92 = memref.load %arg10[%c0_38] : memref<8xf32, #tpu.memory_space<smem>>
      memref.store %cst_37, %arg10[%c0_38] : memref<8xf32, #tpu.memory_space<smem>>
      %cst_39 = arith.constant 0.000000e+00 : f32
      %c1_40 = arith.constant 1 : index
      %93 = memref.load %arg10[%c1_40] : memref<8xf32, #tpu.memory_space<smem>>
      memref.store %cst_39, %arg10[%c1_40] : memref<8xf32, #tpu.memory_space<smem>>
      %cst_41 = arith.constant 0.000000e+00 : f32
      %c2_42 = arith.constant 2 : index
      %94 = memref.load %arg10[%c2_42] : memref<8xf32, #tpu.memory_space<smem>>
      memref.store %cst_41, %arg10[%c2_42] : memref<8xf32, #tpu.memory_space<smem>>
      %cst_43 = arith.constant 0.000000e+00 : f32
      %c3_44 = arith.constant 3 : index
      %95 = memref.load %arg10[%c3_44] : memref<8xf32, #tpu.memory_space<smem>>
      memref.store %cst_43, %arg10[%c3_44] : memref<8xf32, #tpu.memory_space<smem>>
      %cst_45 = arith.constant 0.000000e+00 : f32
      %c4_46 = arith.constant 4 : index
      %96 = memref.load %arg10[%c4_46] : memref<8xf32, #tpu.memory_space<smem>>
      memref.store %cst_45, %arg10[%c4_46] : memref<8xf32, #tpu.memory_space<smem>>
      %cst_47 = arith.constant 0.000000e+00 : f32
      %c5 = arith.constant 5 : index
      %97 = memref.load %arg10[%c5] : memref<8xf32, #tpu.memory_space<smem>>
      memref.store %cst_47, %arg10[%c5] : memref<8xf32, #tpu.memory_space<smem>>
      %cst_48 = arith.constant 0.000000e+00 : f32
      %c6 = arith.constant 6 : index
      %98 = memref.load %arg10[%c6] : memref<8xf32, #tpu.memory_space<smem>>
      memref.store %cst_48, %arg10[%c6] : memref<8xf32, #tpu.memory_space<smem>>
      %cst_49 = arith.constant 0.000000e+00 : f32
      %c7 = arith.constant 7 : index
      %99 = memref.load %arg10[%c7] : memref<8xf32, #tpu.memory_space<smem>>
      memref.store %cst_49, %arg10[%c7] : memref<8xf32, #tpu.memory_space<smem>>
    } else {
    }
    %c0 = arith.constant 0 : index
    %c0_1 = arith.constant 0 : index
    %3 = vector.load %arg1[%c0, %c0_1] : memref<128x16xf32, #tpu.memory_space<vmem>>, vector<128x16xf32>
    %c0_2 = arith.constant 0 : index
    %c0_3 = arith.constant 0 : index
    %4 = vector.load %arg2[%c0_2, %c0_3] : memref<128x16xf32, #tpu.memory_space<vmem>>, vector<128x16xf32>
    %c0_4 = arith.constant 0 : index
    %c0_5 = arith.constant 0 : index
    %5 = vector.load %arg3[%c0_4, %c0_5] : memref<128x1xi32, #tpu.memory_space<vmem>>, vector<128x1xi32>
    %6 = tpu.iota {dimensions = array<i32: 1>} : vector<128x512xi32>
    %7 = vector.broadcast %5 : vector<128x1xi32> to vector<128x512xi32>
    %8 = arith.cmpi eq, %6, %7 : vector<128x512xi32>
    %9 = arith.extui %8 : vector<128x512xi1> to vector<128x512xi32>
    %10 = arith.sitofp %9 : vector<128x512xi32> to vector<128x512xf32>
    %c0_6 = arith.constant 0 : index
    %c0_7 = arith.constant 0 : index
    %11 = vector.load %arg4[%c0_6, %c0_7] : memref<8x512xf32, #tpu.memory_space<vmem>>, vector<1x512xf32>
    %12 = vector.broadcast %11 : vector<1x512xf32> to vector<128x512xf32>
    %13 = arith.mulf %10, %12 : vector<128x512xf32>
    %cst = arith.constant dense<0.000000e+00> : vector<128xf32>
    %14 = vector.multi_reduction <add>, %13, %cst [1] : vector<128x512xf32> to vector<128xf32>
    %15 = vector.shape_cast %14 : vector<128xf32> to vector<128x1xf32>
    %c1 = arith.constant 1 : index
    %c0_8 = arith.constant 0 : index
    %16 = vector.load %arg4[%c1, %c0_8] : memref<8x512xf32, #tpu.memory_space<vmem>>, vector<1x512xf32>
    %17 = vector.broadcast %16 : vector<1x512xf32> to vector<128x512xf32>
    %18 = arith.mulf %10, %17 : vector<128x512xf32>
    %cst_9 = arith.constant dense<0.000000e+00> : vector<128xf32>
    %19 = vector.multi_reduction <add>, %18, %cst_9 [1] : vector<128x512xf32> to vector<128xf32>
    %20 = vector.shape_cast %19 : vector<128xf32> to vector<128x1xf32>
    %21 = arith.sitofp %5 : vector<128x1xi32> to vector<128x1xf32>
    %cst_10 = arith.constant 2.500000e-03 : f32
    %22 = vector.broadcast %cst_10 : f32 to vector<128x1xf32>
    %23 = arith.mulf %21, %22 : vector<128x1xf32>
    %24 = vector.broadcast %15 : vector<128x1xf32> to vector<128x16xf32>
    %25 = arith.mulf %24, %3 : vector<128x16xf32>
    %26 = vector.broadcast %20 : vector<128x1xf32> to vector<128x16xf32>
    %27 = arith.mulf %26, %4 : vector<128x16xf32>
    %28 = arith.addf %25, %27 : vector<128x16xf32>
    %29 = arith.truncf %28 : vector<128x16xf32> to vector<128x16xbf16>
    %c0_11 = arith.constant 0 : index
    %c0_12 = arith.constant 0 : index
    %30 = vector.load %arg5[%c0_11, %c0_12] : memref<16x32xf32, #tpu.memory_space<vmem>>, vector<16x32xf32>
    %31 = arith.truncf %30 : vector<16x32xf32> to vector<16x32xbf16>
    %cst_13 = arith.constant dense<0.000000e+00> : vector<128x32xf32>
    %32 = tpu.matmul %29, %31, %cst_13 {dimension_numbers = #tpu.dot_dimension_numbers<[1], [0], [0], [1], [0, 0, 1, 1], [], []>} : vector<128x16xbf16>, vector<16x32xbf16>, vector<128x32xf32> -> vector<128x32xf32>
    %c0_14 = arith.constant 0 : index
    %c0_15 = arith.constant 0 : index
    %33 = vector.load %arg6[%c0_14, %c0_15] : memref<1x32xf32, #tpu.memory_space<vmem>>, vector<1x32xf32>
    %34 = vector.broadcast %33 : vector<1x32xf32> to vector<128x32xf32>
    %35 = arith.addf %32, %34 : vector<128x32xf32>
    %c0_16 = arith.constant 0 : index
    %c0_17 = arith.constant 0 : index
    %36 = vector.load %arg7[%c0_16, %c0_17] : memref<1x32xf32, #tpu.memory_space<vmem>>, vector<1x32xf32>
    %37 = vector.broadcast %23 : vector<128x1xf32> to vector<128x32xf32>
    %38 = vector.broadcast %36 : vector<1x32xf32> to vector<128x32xf32>
    %39 = arith.mulf %37, %38 : vector<128x32xf32>
    %40 = arith.addf %35, %39 : vector<128x32xf32>
    %cst_18 = arith.constant 0.000000e+00 : f32
    %41 = vector.broadcast %cst_18 : f32 to vector<128x32xf32>
    %42 = arith.maximumf %40, %41 : vector<128x32xf32>
    %43 = arith.truncf %42 : vector<128x32xf32> to vector<128x32xbf16>
    %c0_19 = arith.constant 0 : index
    %c0_20 = arith.constant 0 : index
    %44 = vector.load %arg8[%c0_19, %c0_20] : memref<32x16xf32, #tpu.memory_space<vmem>>, vector<32x16xf32>
    %45 = arith.truncf %44 : vector<32x16xf32> to vector<32x16xbf16>
    %cst_21 = arith.constant dense<0.000000e+00> : vector<128x16xf32>
    %46 = tpu.matmul %43, %45, %cst_21 {dimension_numbers = #tpu.dot_dimension_numbers<[1], [0], [0], [1], [0, 0, 1, 1], [], []>} : vector<128x32xbf16>, vector<32x16xbf16>, vector<128x16xf32> -> vector<128x16xf32>
    %c0_22 = arith.constant 0 : index
    %c0_23 = arith.constant 0 : index
    %47 = vector.load %arg9[%c0_22, %c0_23] : memref<1x16xf32, #tpu.memory_space<vmem>>, vector<1x16xf32>
    %48 = vector.broadcast %47 : vector<1x16xf32> to vector<128x16xf32>
    %49 = arith.addf %46, %48 : vector<128x16xf32>
    %50 = arith.subf %4, %49 : vector<128x16xf32>
    %c0_24 = arith.constant 0 : index
    %51 = memref.load %arg10[%c0_24] : memref<8xf32, #tpu.memory_space<smem>>
    %52 = arith.mulf %50, %50 : vector<128x16xf32>
    %53 = vector.shape_cast %52 : vector<128x16xf32> to vector<1x128x16xf32>
    %cst_25 = arith.constant dense<0.000000e+00> : vector<1xf32>
    %54 = vector.multi_reduction <add>, %53, %cst_25 [1, 2] : vector<1x128x16xf32> to vector<1xf32>
    %55 = vector.shape_cast %54 : vector<1xf32> to vector<1x1x1xf32>
    %56 = vector.extract %55[0, 0, 0] : f32 from vector<1x1x1xf32>
    %57 = arith.addf %51, %56 : f32
    %c0_26 = arith.constant 0 : index
    %58 = memref.load %arg10[%c0_26] : memref<8xf32, #tpu.memory_space<smem>>
    memref.store %57, %arg10[%c0_26] : memref<8xf32, #tpu.memory_space<smem>>
    %c1_27 = arith.constant 1 : index
    %59 = memref.load %arg10[%c1_27] : memref<8xf32, #tpu.memory_space<smem>>
    %60 = vector.shape_cast %4 : vector<128x16xf32> to vector<1x128x16xf32>
    %cst_28 = arith.constant dense<0.000000e+00> : vector<1xf32>
    %61 = vector.multi_reduction <add>, %60, %cst_28 [1, 2] : vector<1x128x16xf32> to vector<1xf32>
    %62 = vector.shape_cast %61 : vector<1xf32> to vector<1x1x1xf32>
    %63 = vector.extract %62[0, 0, 0] : f32 from vector<1x1x1xf32>
    %64 = arith.addf %59, %63 : f32
    %c1_29 = arith.constant 1 : index
    %65 = memref.load %arg10[%c1_29] : memref<8xf32, #tpu.memory_space<smem>>
    memref.store %64, %arg10[%c1_29] : memref<8xf32, #tpu.memory_space<smem>>
    %c2 = arith.constant 2 : index
    %66 = memref.load %arg10[%c2] : memref<8xf32, #tpu.memory_space<smem>>
    %67 = arith.mulf %4, %4 : vector<128x16xf32>
    %68 = vector.shape_cast %67 : vector<128x16xf32> to vector<1x128x16xf32>
    %cst_30 = arith.constant dense<0.000000e+00> : vector<1xf32>
    %69 = vector.multi_reduction <add>, %68, %cst_30 [1, 2] : vector<1x128x16xf32> to vector<1xf32>
    %70 = vector.shape_cast %69 : vector<1xf32> to vector<1x1x1xf32>
    %71 = vector.extract %70[0, 0, 0] : f32 from vector<1x1x1xf32>
    %72 = arith.addf %66, %71 : f32
    %c2_31 = arith.constant 2 : index
    %73 = memref.load %arg10[%c2_31] : memref<8xf32, #tpu.memory_space<smem>>
    memref.store %72, %arg10[%c2_31] : memref<8xf32, #tpu.memory_space<smem>>
    %c3 = arith.constant 3 : index
    %74 = memref.load %arg10[%c3] : memref<8xf32, #tpu.memory_space<smem>>
    %75 = vector.shape_cast %49 : vector<128x16xf32> to vector<1x128x16xf32>
    %cst_32 = arith.constant dense<0.000000e+00> : vector<1xf32>
    %76 = vector.multi_reduction <add>, %75, %cst_32 [1, 2] : vector<1x128x16xf32> to vector<1xf32>
    %77 = vector.shape_cast %76 : vector<1xf32> to vector<1x1x1xf32>
    %78 = vector.extract %77[0, 0, 0] : f32 from vector<1x1x1xf32>
    %79 = arith.addf %74, %78 : f32
    %c3_33 = arith.constant 3 : index
    %80 = memref.load %arg10[%c3_33] : memref<8xf32, #tpu.memory_space<smem>>
    memref.store %79, %arg10[%c3_33] : memref<8xf32, #tpu.memory_space<smem>>
    %c4 = arith.constant 4 : index
    %81 = memref.load %arg10[%c4] : memref<8xf32, #tpu.memory_space<smem>>
    %82 = arith.mulf %49, %49 : vector<128x16xf32>
    %83 = vector.shape_cast %82 : vector<128x16xf32> to vector<1x128x16xf32>
    %cst_34 = arith.constant dense<0.000000e+00> : vector<1xf32>
    %84 = vector.multi_reduction <add>, %83, %cst_34 [1, 2] : vector<1x128x16xf32> to vector<1xf32>
    %85 = vector.shape_cast %84 : vector<1xf32> to vector<1x1x1xf32>
    %86 = vector.extract %85[0, 0, 0] : f32 from vector<1x1x1xf32>
    %87 = arith.addf %81, %86 : f32
    %c4_35 = arith.constant 4 : index
    %88 = memref.load %arg10[%c4_35] : memref<8xf32, #tpu.memory_space<smem>>
    memref.store %87, %arg10[%c4_35] : memref<8xf32, #tpu.memory_space<smem>>
    %c1_i32 = arith.constant 1 : i32
    %89 = arith.cmpi eq, %arg0, %c1_i32 : i32
    %90 = arith.extui %89 : i1 to i32
    %c0_i32_36 = arith.constant 0 : i32
    %91 = arith.cmpi ne, %90, %c0_i32_36 : i32
    scf.if %91 {
      %c0_37 = arith.constant 0 : index
      %92 = memref.load %arg10[%c0_37] : memref<8xf32, #tpu.memory_space<smem>>
      %cst_38 = arith.constant 2.44140625E-4 : f32
      %93 = arith.mulf %92, %cst_38 : f32
      %c0_39 = arith.constant 0 : index
      %94 = memref.load %arg10[%c0_39] : memref<8xf32, #tpu.memory_space<smem>>
      memref.store %93, %arg10[%c0_39] : memref<8xf32, #tpu.memory_space<smem>>
    } else {
    }
    return
  }
  func.func @transform_0(%arg0: i32) -> (i32, i32) {
    %c0_i32 = arith.constant 0 : i32
    %c0_i32_0 = arith.constant 0 : i32
    return %arg0, %c0_i32 : i32, i32
  }
  func.func @transform_1(%arg0: i32) -> (i32, i32) {
    %c0_i32 = arith.constant 0 : i32
    %c0_i32_0 = arith.constant 0 : i32
    return %arg0, %c0_i32 : i32, i32
  }
  func.func @transform_2(%arg0: i32) -> (i32, i32) {
    %c0_i32 = arith.constant 0 : i32
    %c0_i32_0 = arith.constant 0 : i32
    return %arg0, %c0_i32 : i32, i32
  }
  func.func @transform_3(%arg0: i32) -> (i32, i32) {
    %c0_i32 = arith.constant 0 : i32
    %c0_i32_0 = arith.constant 0 : i32
    %c0_i32_1 = arith.constant 0 : i32
    return %c0_i32, %c0_i32_0 : i32, i32
  }
  func.func @transform_4(%arg0: i32) -> (i32, i32) {
    %c0_i32 = arith.constant 0 : i32
    %c0_i32_0 = arith.constant 0 : i32
    %c0_i32_1 = arith.constant 0 : i32
    return %c0_i32, %c0_i32_0 : i32, i32
  }
  func.func @transform_5(%arg0: i32) -> (i32, i32) {
    %c0_i32 = arith.constant 0 : i32
    %c0_i32_0 = arith.constant 0 : i32
    %c0_i32_1 = arith.constant 0 : i32
    return %c0_i32, %c0_i32_0 : i32, i32
  }
  func.func @transform_6(%arg0: i32) -> (i32, i32) {
    %c0_i32 = arith.constant 0 : i32
    %c0_i32_0 = arith.constant 0 : i32
    %c0_i32_1 = arith.constant 0 : i32
    return %c0_i32, %c0_i32_0 : i32, i32
  }
  func.func @transform_7(%arg0: i32) -> (i32, i32) {
    %c0_i32 = arith.constant 0 : i32
    %c0_i32_0 = arith.constant 0 : i32
    %c0_i32_1 = arith.constant 0 : i32
    return %c0_i32, %c0_i32_0 : i32, i32
  }
  func.func @transform_8(%arg0: i32) -> (i32, i32) {
    %c0_i32 = arith.constant 0 : i32
    %c0_i32_0 = arith.constant 0 : i32
    %c0_i32_1 = arith.constant 0 : i32
    return %c0_i32, %c0_i32_0 : i32, i32
  }
  func.func @transform_9(%arg0: i32) -> i32 {
    %c0_i32 = arith.constant 0 : i32
    %c0_i32_0 = arith.constant 0 : i32
    return %c0_i32 : i32
  }
}

</mosaic_0001>

<llo_original>
// kernel: ddpm_forward.1
$region0: #{ddpm_forward.1}
  #allocation0 [shape = 'u32[]', space=smem, size = 0x4, offset = 0x4, fixed_abs, tag = 'smem constant byte address 0x4 - core index']
  #allocation1 [shape = 'u32[144,128]{1,0:T(1,128)}', space=vmem, size = 0x12000, scoped, tag = 'internal scratch']
  %s0 = inlined_call_operand.vmem [shape: f32[256,16], index: 0, kind: input, shape index: {}]
  %s1 = inlined_call_operand.vmem [shape: f32[256,16], index: 1, kind: input, shape index: {}]
  %s2 = inlined_call_operand.vmem [shape: s32[256,1], index: 2, kind: input, shape index: {}]
  %s3 = inlined_call_operand.vmem [shape: f32[8,512], index: 3, kind: input, shape index: {}]
  %s4 = inlined_call_operand.vmem [shape: f32[16,32], index: 4, kind: input, shape index: {}]
  %s5 = inlined_call_operand.vmem [shape: f32[1,32], index: 5, kind: input, shape index: {}]
  %s6 = inlined_call_operand.vmem [shape: f32[1,32], index: 6, kind: input, shape index: {}]
  %s7 = inlined_call_operand.vmem [shape: f32[32,16], index: 7, kind: input, shape index: {}]
  %s8 = inlined_call_operand.vmem [shape: f32[1,16], index: 8, kind: input, shape index: {}]
  %s9 = inlined_call_operand.vmem [shape: f32[8], index: 9, kind: output, shape index: {}]
  %s10 = sld [smem:[#allocation0]]
  $region77: #{ddpm_forward.1} parent=0
    _
  %s12 = ssub.s32 1, %s10
  %s13 = scalar_select 0, %s12, %s10
  $region1: #{ddpm_forward.1} parent=0
    #allocation2 [shape = 'u8[512]{0}', space=smem, size = 0x200, scoped, tag = 'output window, operand 0, single buffered']
    #allocation3 [shape = 's32[2]{0}', space=sflag, size = 0x8, scoped, tag = 'scoped memory for ddpm_forward.1']
    %14 = vsyncpa [#allocation3], 0
    loop: start=0, step=1, limit=4
    $region2: #{ddpm_forward.1} parent=1 // loop_pre_header
      _
    $region3: #{ddpm_forward.1} parent=1 // loop_header
      %s16 = sphi 0, %s20
      %p17 = scmp.ge.s32.totalorder %s16, 4
      %s26 = sphi 0, %s28
      %s29 = sphi 0, %s26
      %s30 = sphi 0, %s29
      %s46 = sphi 0, %s30
      %s52 = sphi 0, %s54
      %s55 = sphi 0, %s52
      %s56 = sphi 0, %s55
      %s72 = sphi 0, %s56
      %s78 = sphi 0, %s80
      %s81 = sphi 0, %s78
      %s82 = sphi 0, %s81
      %s98 = sphi 0, %s82
      %s102 = sphi 0, %s102
      %s104 = sphi 0, %s102
      %s105 = sphi 0, %s104
      %s119 = sphi 0, %s105
      %s123 = sphi 0, %s123
      %s125 = sphi 0, %s123
      %s126 = sphi 0, %s125
      %s140 = sphi 0, %s126
      %s144 = sphi 0, %s144
      %s146 = sphi 0, %s144
      %s147 = sphi 0, %s146
      %s161 = sphi 0, %s147
      %s165 = sphi 0, %s165
      %s167 = sphi 0, %s165
      %s168 = sphi 0, %s167
      %s182 = sphi 0, %s168
      %s186 = sphi 0, %s186
      %s188 = sphi 0, %s186
      %s189 = sphi 0, %s188
      %s203 = sphi 0, %s189
      %s207 = sphi 0, %s207
      %s209 = sphi 0, %s207
      %s210 = sphi 0, %s209
      %s224 = sphi 0, %s210
      %s228 = sphi 0, %s228
      %s230 = sphi 0, %s228
      %s231 = sphi 0, %s230
      %s245 = sphi 0, %s231
    $region4: #{ddpm_forward.1} parent=1 // loop_header_branch
      %19 = sbr.rel (%p17) target = $region8
    $region5: #{ddpm_forward.1} parent=1 // loop_body
      %s21 = ssub.s32 %s16, 1
      %s22 = ssub.s32 %s16, 2
      %s23 = sadd.s32 %s16, 1
      %s24 = ssub.s32 %s16, %s23
      %p25 = scmp.eq.s32.totalorder %s24, 0
      %s27 = sadd.s32 %s26, 1
      %s28 = scalar_select %p25, %s26, %s27
      %p31 = pneg %p25
      %p32 = scmp.eq.s32.totalorder %s16, 1
      %p33 = por %p31, %p32
      %p34 = scmp.ne.s32.totalorder %s26, %s29
      %p35 = scmp.eq.s32.totalorder %s16, 0
      %p36 = por %p34, %p35
      %p37 = scmp.ne.s32.totalorder %s26, %s29
      %p38 = scmp.eq.s32.totalorder %s21, 1
      %p39 = por %p37, %p38
      %p40 = scmp.ne.s32.totalorder %s29, %s30
      %p41 = scmp.eq.s32.totalorder %s21, 0
      %p42 = por %p40, %p41
      %p43 = scmp.ne.s32.totalorder %s29, %s30
      %p44 = scmp.eq.s32.totalorder %s22, 1
      %p45 = por %p43, %p44
      %p47 = scmp.ne.s32.totalorder %s30, %s46
      %p48 = scmp.eq.s32.totalorder %s22, 0
      %p49 = por %p47, %p48
      %s50 = ssub.s32 %s16, %s23
      %p51 = scmp.eq.s32.totalorder %s50, 0
      %s53 = sadd.s32 %s52, 1
      %s54 = scalar_select %p51, %s52, %s53
      %p57 = pneg %p51
      %p58 = scmp.eq.s32.totalorder %s16, 1
      %p59 = por %p57, %p58
      %p60 = scmp.ne.s32.totalorder %s52, %s55
      %p61 = scmp.eq.s32.totalorder %s16, 0
      %p62 = por %p60, %p61
      %p63 = scmp.ne.s32.totalorder %s52, %s55
      %p64 = scmp.eq.s32.totalorder %s21, 1
      %p65 = por %p63, %p64
      %p66 = scmp.ne.s32.totalorder %s55, %s56
      %p67 = scmp.eq.s32.totalorder %s21, 0
      %p68 = por %p66, %p67
      %p69 = scmp.ne.s32.totalorder %s55, %s56
      %p70 = scmp.eq.s32.totalorder %s22, 1
      %p71 = por %p69, %p70
      %p73 = scmp.ne.s32.totalorder %s56, %s72
      %p74 = scmp.eq.s32.totalorder %s22, 0
      %p75 = por %p73, %p74
      %s76 = ssub.s32 %s16, %s23
      %p77 = scmp.eq.s32.totalorder %s76, 0
      %s79 = sadd.s32 %s78, 1
      %s80 = scalar_select %p77, %s78, %s79
      %p83 = pneg %p77
      %p84 = scmp.eq.s32.totalorder %s16, 1
      %p85 = por %p83, %p84
      %p86 = scmp.ne.s32.totalorder %s78, %s81
      %p87 = scmp.eq.s32.totalorder %s16, 0
      %p88 = por %p86, %p87
      %p89 = scmp.ne.s32.totalorder %s78, %s81
      %p90 = scmp.eq.s32.totalorder %s21, 1
      %p91 = por %p89, %p90
      %p92 = scmp.ne.s32.totalorder %s81, %s82
      %p93 = scmp.eq.s32.totalorder %s21, 0
      %p94 = por %p92, %p93
      %p95 = scmp.ne.s32.totalorder %s81, %s82
      %p96 = scmp.eq.s32.totalorder %s22, 1
      %p97 = por %p95, %p96
      %p99 = scmp.ne.s32.totalorder %s82, %s98
      %p100 = scmp.eq.s32.totalorder %s22, 0
      %p101 = por %p99, %p100
      %s103 = sadd.s32 %s102, 1
      %p106 = scmp.eq.s32.totalorder %s16, 1
      %p107 = scmp.ne.s32.totalorder %s102, %s104
      %p108 = scmp.eq.s32.totalorder %s16, 0
      %p109 = por %p107, %p108
      %p110 = scmp.ne.s32.totalorder %s102, %s104
      %p111 = scmp.eq.s32.totalorder %s21, 1
      %p112 = por %p110, %p111
      %p113 = scmp.ne.s32.totalorder %s104, %s105
      %p114 = scmp.eq.s32.totalorder %s21, 0
      %p115 = por %p113, %p114
      %p116 = scmp.ne.s32.totalorder %s104, %s105
      %p117 = scmp.eq.s32.totalorder %s22, 1
      %p118 = por %p116, %p117
      %p120 = scmp.ne.s32.totalorder %s105, %s119
      %p121 = scmp.eq.s32.totalorder %s22, 0
      %p122 = por %p120, %p121
      %s124 = sadd.s32 %s123, 1
      %p127 = scmp.eq.s32.totalorder %s16, 1
      %p128 = scmp.ne.s32.totalorder %s123, %s125
      %p129 = scmp.eq.s32.totalorder %s16, 0
      %p130 = por %p128, %p129
      %p131 = scmp.ne.s32.totalorder %s123, %s125
      %p132 = scmp.eq.s32.totalorder %s21, 1
      %p133 = por %p131, %p132
      %p134 = scmp.ne.s32.totalorder %s125, %s126
      %p135 = scmp.eq.s32.totalorder %s21, 0
      %p136 = por %p134, %p135
      %p137 = scmp.ne.s32.totalorder %s125, %s126
      %p138 = scmp.eq.s32.totalorder %s22, 1
      %p139 = por %p137, %p138
      %p141 = scmp.ne.s32.totalorder %s126, %s140
      %p142 = scmp.eq.s32.totalorder %s22, 0
      %p143 = por %p141, %p142
      %s145 = sadd.s32 %s144, 1
      %p148 = scmp.eq.s32.totalorder %s16, 1
      %p149 = scmp.ne.s32.totalorder %s144, %s146
      %p150 = scmp.eq.s32.totalorder %s16, 0
      %p151 = por %p149, %p150
      %p152 = scmp.ne.s32.totalorder %s144, %s146
      %p153 = scmp.eq.s32.totalorder %s21, 1
      %p154 = por %p152, %p153
      %p155 = scmp.ne.s32.totalorder %s146, %s147
      %p156 = scmp.eq.s32.totalorder %s21, 0
      %p157 = por %p155, %p156
      %p158 = scmp.ne.s32.totalorder %s146, %s147
      %p159 = scmp.eq.s32.totalorder %s22, 1
      %p160 = por %p158, %p159
      %p162 = scmp.ne.s32.totalorder %s147, %s161
      %p163 = scmp.eq.s32.totalorder %s22, 0
      %p164 = por %p162, %p163
      %s166 = sadd.s32 %s165, 1
      %p169 = scmp.eq.s32.totalorder %s16, 1
      %p170 = scmp.ne.s32.totalorder %s165, %s167
      %p171 = scmp.eq.s32.totalorder %s16, 0
      %p172 = por %p170, %p171
      %p173 = scmp.ne.s32.totalorder %s165, %s167
      %p174 = scmp.eq.s32.totalorder %s21, 1
      %p175 = por %p173, %p174
      %p176 = scmp.ne.s32.totalorder %s167, %s168
      %p177 = scmp.eq.s32.totalorder %s21, 0
      %p178 = por %p176, %p177
      %p179 = scmp.ne.s32.totalorder %s167, %s168
      %p180 = scmp.eq.s32.totalorder %s22, 1
      %p181 = por %p179, %p180
      %p183 = scmp.ne.s32.totalorder %s168, %s182
      %p184 = scmp.eq.s32.totalorder %s22, 0
      %p185 = por %p183, %p184
      %s187 = sadd.s32 %s186, 1
      %p190 = scmp.eq.s32.totalorder %s16, 1
      %p191 = scmp.ne.s32.totalorder %s186, %s188
      %p192 = scmp.eq.s32.totalorder %s16, 0
      %p193 = por %p191, %p192
      %p194 = scmp.ne.s32.totalorder %s186, %s188
      %p195 = scmp.eq.s32.totalorder %s21, 1
      %p196 = por %p194, %p195
      %p197 = scmp.ne.s32.totalorder %s188, %s189
      %p198 = scmp.eq.s32.totalorder %s21, 0
      %p199 = por %p197, %p198
      %p200 = scmp.ne.s32.totalorder %s188, %s189
      %p201 = scmp.eq.s32.totalorder %s22, 1
      %p202 = por %p200, %p201
      %p204 = scmp.ne.s32.totalorder %s189, %s203
      %p205 = scmp.eq.s32.totalorder %s22, 0
      %p206 = por %p204, %p205
      %s208 = sadd.s32 %s207, 1
      %p211 = scmp.eq.s32.totalorder %s16, 1
      %p212 = scmp.ne.s32.totalorder %s207, %s209
      %p213 = scmp.eq.s32.totalorder %s16, 0
      %p214 = por %p212, %p213
      %p215 = scmp.ne.s32.totalorder %s207, %s209
      %p216 = scmp.eq.s32.totalorder %s21, 1
      %p217 = por %p215, %p216
      %p218 = scmp.ne.s32.totalorder %s209, %s210
      %p219 = scmp.eq.s32.totalorder %s21, 0
      %p220 = por %p218, %p219
      %p221 = scmp.ne.s32.totalorder %s209, %s210
      %p222 = scmp.eq.s32.totalorder %s22, 1
      %p223 = por %p221, %p222
      %p225 = scmp.ne.s32.totalorder %s210, %s224
      %p226 = scmp.eq.s32.totalorder %s22, 0
      %p227 = por %p225, %p226
      %s229 = sadd.s32 %s228, 1
      %p232 = scmp.eq.s32.totalorder %s16, 1
      %p233 = scmp.ne.s32.totalorder %s228, %s230
      %p234 = scmp.eq.s32.totalorder %s16, 0
      %p235 = por %p233, %p234
      %p236 = scmp.ne.s32.totalorder %s228, %s230
      %p237 = scmp.eq.s32.totalorder %s21, 1
      %p238 = por %p236, %p237
      %p239 = scmp.ne.s32.totalorder %s230, %s231
      %p240 = scmp.eq.s32.totalorder %s21, 0
      %p241 = por %p239, %p240
      %p242 = scmp.ne.s32.totalorder %s230, %s231
      %p243 = scmp.eq.s32.totalorder %s22, 1
      %p244 = por %p242, %p243
      %p246 = scmp.ne.s32.totalorder %s231, %s245
      %p247 = scmp.eq.s32.totalorder %s22, 0
      %p248 = por %p246, %p247
      %p249 = scmp.le.s32.totalorder 1, %s16
      %p250 = scmp.lt.s32.totalorder %s16, 3
      %p251 = pnand %p249, %p250
      %p252 = pneg %p251
      // Predicated region
      $region9: #{ddpm_forward.1} parent=5 // pred_check
        _
      $region10: #{ddpm_forward.1} parent=5 // pred_check_branch
        %254 = sbr.rel (%p251) target = $region12
      $region11: #{ddpm_forward.1} parent=5 // pred_region
        %s255 = ssub.s32 %s16, 1
        // Predicated region
        $region13: #{ddpm_forward.1} parent=11 // pred_check
          %p256 = pneg %p115
        $region14: #{ddpm_forward.1} parent=11 // pred_check_branch
          %258 = sbr.rel (%p256) target = $region16
        $region15: #{ddpm_forward.1} parent=11 // pred_region
          _
        $region16: #{ddpm_forward.1} parent=11 // pred_fallthru
          _
        // Predicated region
        $region17: #{ddpm_forward.1} parent=11 // pred_check
          %p259 = pneg %p136
        $region18: #{ddpm_forward.1} parent=11 // pred_check_branch
          %261 = sbr.rel (%p259) target = $region20
        $region19: #{ddpm_forward.1} parent=11 // pred_region
          _
        $region20: #{ddpm_forward.1} parent=11 // pred_fallthru
          _
        // Predicated region
        $region21: #{ddpm_forward.1} parent=11 // pred_check
          %p262 = pneg %p157
        $region22: #{ddpm_forward.1} parent=11 // pred_check_branch
          %264 = sbr.rel (%p262) target = $region24
        $region23: #{ddpm_forward.1} parent=11 // pred_region
          _
        $region24: #{ddpm_forward.1} parent=11 // pred_fallthru
          _
        // Predicated region
        $region25: #{ddpm_forward.1} parent=11 // pred_check
          %p265 = pneg %p178
        $region26: #{ddpm_forward.1} parent=11 // pred_check_branch
          %267 = sbr.rel (%p265) target = $region28
        $region27: #{ddpm_forward.1} parent=11 // pred_region
          _
        $region28: #{ddpm_forward.1} parent=11 // pred_fallthru
          _
        // Predicated region
        $region29: #{ddpm_forward.1} parent=11 // pred_check
          %p268 = pneg %p199
        $region30: #{ddpm_forward.1} parent=11 // pred_check_branch
          %270 = sbr.rel (%p268) target = $region32
        $region31: #{ddpm_forward.1} parent=11 // pred_region
          _
        $region32: #{ddpm_forward.1} parent=11 // pred_fallthru
          _
        // Predicated region
        $region33: #{ddpm_forward.1} parent=11 // pred_check
          %p271 = pneg %p220
        $region34: #{ddpm_forward.1} parent=11 // pred_check_branch
          %273 = sbr.rel (%p271) target = $region36
        $region35: #{ddpm_forward.1} parent=11 // pred_region
          _
        $region36: #{ddpm_forward.1} parent=11 // pred_fallthru
          _
      $region12: #{ddpm_forward.1} parent=5 // pred_fallthru
        _
      %p274 = scmp.lt.s32.totalorder %s16, 2
      // Predicated region
      $region37: #{ddpm_forward.1} parent=5 // pred_check
        %p275 = pneg %p274
      $region38: #{ddpm_forward.1} parent=5 // pred_check_branch
        %277 = sbr.rel (%p275) target = $region40
      $region39: #{ddpm_forward.1} parent=5 // pred_region
        // Predicated region
        $region41: #{ddpm_forward.1} parent=39 // pred_check
          %p278 = pneg %p36
        $region42: #{ddpm_forward.1} parent=39 // pred_check_branch
          %280 = sbr.rel (%p278) target = $region44
        $region43: #{ddpm_forward.1} parent=39 // pred_region
          %s281 = smul.u32 16, %s16
          %p282 = scmp.lt.s32.totalorder %s281, 31
          %s283 = scalar_select %p282, %s281, 31
          %s284 = smul.addr %s283, 8
          %s285 = scalar_lea.vmem %s0, %s284
          %s286 = smul.u32 16, %s16
        $region44: #{ddpm_forward.1} parent=39 // pred_fallthru
          _
        // Predicated region
        $region45: #{ddpm_forward.1} parent=39 // pred_check
          %p287 = pneg %p62
        $region46: #{ddpm_forward.1} parent=39 // pred_check_branch
          %289 = sbr.rel (%p287) target = $region48
        $region47: #{ddpm_forward.1} parent=39 // pred_region
          %s290 = smul.u32 16, %s16
          %p291 = scmp.lt.s32.totalorder %s290, 31
          %s292 = scalar_select %p291, %s290, 31
          %s293 = smul.addr %s292, 8
          %s294 = scalar_lea.vmem %s1, %s293
          %s295 = smul.u32 16, %s16
        $region48: #{ddpm_forward.1} parent=39 // pred_fallthru
          _
        // Predicated region
        $region49: #{ddpm_forward.1} parent=39 // pred_check
          %p296 = pneg %p88
        $region50: #{ddpm_forward.1} parent=39 // pred_check_branch
          %298 = sbr.rel (%p296) target = $region52
        $region51: #{ddpm_forward.1} parent=39 // pred_region
          %s299 = smul.u32 16, %s16
          %p300 = scmp.lt.s32.totalorder %s299, 31
          %s301 = scalar_select %p300, %s299, 31
          %s302 = smul.addr %s301, 8
          %s303 = scalar_lea.vmem %s2, %s302
          %s304 = smul.u32 16, %s16
        $region52: #{ddpm_forward.1} parent=39 // pred_fallthru
          _
      $region40: #{ddpm_forward.1} parent=5 // pred_fallthru
        _
      %p305 = scmp.le.s32.totalorder 1, %s16
      %p306 = scmp.lt.s32.totalorder %s16, 3
      %p307 = pnand %p305, %p306
      %p308 = pneg %p307
      // Predicated region
      $region53: #{ddpm_forward.1} parent=5 // pred_check
        _
      $region54: #{ddpm_forward.1} parent=5 // pred_check_branch
        %310 = sbr.rel (%p307) target = $region56
      $region55: #{ddpm_forward.1} parent=5 // pred_region
        %s311 = ssub.s32 %s16, 1
        %s312 = smul.u32 16, %s21
        %p313 = scmp.lt.s32.totalorder %s312, 31
        %s314 = scalar_select %p313, %s312, 31
        %s315 = smul.addr %s314, 8
        %s316 = scalar_lea.vmem %s0, %s315
        %p317 = pneg %p42
        %p318 = pneg %p39
        %s319 = smul.u32 16, %s21
        %p320 = scmp.lt.s32.totalorder %s319, 31
        %s321 = scalar_select %p320, %s319, 31
        %s322 = smul.addr %s321, 8
        %s323 = scalar_lea.vmem %s1, %s322
        %p324 = pneg %p68
        %p325 = pneg %p65
        %s326 = smul.u32 16, %s21
        %p327 = scmp.lt.s32.totalorder %s326, 31
        %s328 = scalar_select %p327, %s326, 31
        %s329 = smul.addr %s328, 8
        %s330 = scalar_lea.vmem %s2, %s329
        %p331 = pneg %p94
        %p332 = pneg %p91
        %p333 = pneg %p115
        %p334 = pneg %p112
        %p335 = pneg %p136
        %p336 = pneg %p133
        %p337 = pneg %p157
        %p338 = pneg %p154
        %p339 = pneg %p178
        %p340 = pneg %p175
        %p341 = pneg %p199
        %p342 = pneg %p196
        %p343 = pneg %p220
        %p344 = pneg %p217
        %p345 = pneg %p241
        %p346 = pneg %p238
        %s347 = smul.u32 16, %s21
        %p348 = scmp.lt.s32.totalorder %s347, 31
        %s349 = scalar_select %p348, %s347, 31
        %s350 = smul.addr %s349, 8
        %s351 = scalar_lea.vmem %s0, %s350
        %s352 = smul.u32 16, %s21
        %s353 = smul.u32 16, %s21
        %p354 = scmp.lt.s32.totalorder %s353, 31
        %s355 = scalar_select %p354, %s353, 31
        %s356 = smul.addr %s355, 8
        %s357 = scalar_lea.vmem %s1, %s356
        %s358 = smul.u32 16, %s21
        %s359 = smul.u32 16, %s21
        %p360 = scmp.lt.s32.totalorder %s359, 31
        %s361 = scalar_select %p360, %s359, 31
        %s362 = smul.addr %s361, 8
        %s363 = scalar_lea.vmem %s2, %s362
        %s364 = smul.u32 16, %s21
        %p366 = scmp.eq.s32.totalorder %s21, 0
        // Predicated region
        $region57: #{ddpm_forward.1} parent=55 // pred_check
          %p367 = pneg %p366
        $region58: #{ddpm_forward.1} parent=55 // pred_check_branch
          %369 = sbr.rel (%p367) target = $region60
        $region59: #{ddpm_forward.1} parent=55 // pred_region
          %s370 = scalar_lea.smem [#allocation2], 0
          %371 = sst [smem:[%s370]] 0.0
          %s372 = scalar_lea.smem [#allocation2], 1
          %373 = sst [smem:[%s372]] 0.0
          %s374 = scalar_lea.smem [#allocation2], 2
          %375 = sst [smem:[%s374]] 0.0
          %s376 = scalar_lea.smem [#allocation2], 3
          %377 = sst [smem:[%s376]] 0.0
          %s378 = scalar_lea.smem [#allocation2], 4
          %379 = sst [smem:[%s378]] 0.0
          %s380 = scalar_lea.smem [#allocation2], 5
          %381 = sst [smem:[%s380]] 0.0
          %s382 = scalar_lea.smem [#allocation2], 6
          %383 = sst [smem:[%s382]] 0.0
          %s384 = scalar_lea.smem [#allocation2], 7
          %385 = sst [smem:[%s384]] 0.0
        $region60: #{ddpm_forward.1} parent=55 // pred_fallthru
          _
        %v386 = vld [vmem:[%s351] sm:$0xff]
        %v387 = vld [vmem:[%s351 + $0x8] sm:$0xff]
        %v388 = vld [vmem:[%s351 + $0x10] sm:$0xff]
        %v389 = vld [vmem:[%s351 + $0x18] sm:$0xff]
        %v390 = vld [vmem:[%s351 + $0x20] sm:$0xff]
        %v391 = vld [vmem:[%s351 + $0x28] sm:$0xff]
        %v392 = vld [vmem:[%s351 + $0x30] sm:$0xff]
        %v393 = vld [vmem:[%s351 + $0x38] sm:$0xff]
        %v394 = vld [vmem:[%s351 + $0x40] sm:$0xff]
        %v395 = vld [vmem:[%s351 + $0x48] sm:$0xff]
        %v396 = vld [vmem:[%s351 + $0x50] sm:$0xff]
        %v397 = vld [vmem:[%s351 + $0x58] sm:$0xff]
        %v398 = vld [vmem:[%s351 + $0x60] sm:$0xff]
        %v399 = vld [vmem:[%s351 + $0x68] sm:$0xff]
        %v400 = vld [vmem:[%s351 + $0x70] sm:$0xff]
        %v401 = vld [vmem:[%s351 + $0x78] sm:$0xff]
        %v402 = vld [vmem:[%s357] sm:$0xff]
        %v403 = vld [vmem:[%s357 + $0x8] sm:$0xff]
        %v404 = vld [vmem:[%s357 + $0x10] sm:$0xff]
        %v405 = vld [vmem:[%s357 + $0x18] sm:$0xff]
        %v406 = vld [vmem:[%s357 + $0x20] sm:$0xff]
        %v407 = vld [vmem:[%s357 + $0x28] sm:$0xff]
        %v408 = vld [vmem:[%s357 + $0x30] sm:$0xff]
        %v409 = vld [vmem:[%s357 + $0x38] sm:$0xff]
        %v410 = vld [vmem:[%s357 + $0x40] sm:$0xff]
        %v411 = vld [vmem:[%s357 + $0x48] sm:$0xff]
        %v412 = vld [vmem:[%s357 + $0x50] sm:$0xff]
        %v413 = vld [vmem:[%s357 + $0x58] sm:$0xff]
        %v414 = vld [vmem:[%s357 + $0x60] sm:$0xff]
        %v415 = vld [vmem:[%s357 + $0x68] sm:$0xff]
        %v416 = vld [vmem:[%s357 + $0x70] sm:$0xff]
        %v417 = vld [vmem:[%s357 + $0x78] sm:$0xff]
        %v418 = vld [vmem:[%s363] sm:$0xff]
        %v419 = vld [vmem:[%s363 + $0x8] sm:$0xff]
        %v420 = vld [vmem:[%s363 + $0x10] sm:$0xff]
        %v421 = vld [vmem:[%s363 + $0x18] sm:$0xff]
        %v422 = vld [vmem:[%s363 + $0x20] sm:$0xff]
        %v423 = vld [vmem:[%s363 + $0x28] sm:$0xff]
        %v424 = vld [vmem:[%s363 + $0x30] sm:$0xff]
        %v425 = vld [vmem:[%s363 + $0x38] sm:$0xff]
        %v426 = vld [vmem:[%s363 + $0x40] sm:$0xff]
        %v427 = vld [vmem:[%s363 + $0x48] sm:$0xff]
        %v428 = vld [vmem:[%s363 + $0x50] sm:$0xff]
        %v429 = vld [vmem:[%s363 + $0x58] sm:$0xff]
        %v430 = vld [vmem:[%s363 + $0x60] sm:$0xff]
        %v431 = vld [vmem:[%s363 + $0x68] sm:$0xff]
        %v432 = vld [vmem:[%s363 + $0x70] sm:$0xff]
        %v433 = vld [vmem:[%s363 + $0x78] sm:$0xff]
        %v434 = vlaneseq
        %v435 = vand.u32 %v434, 127
        %v436 = vadd.s32 %v435, 128
        %v437 = vadd.s32 %v435, 256
        %v438 = vadd.s32 %v435, 384
        %439 = vset.pattern.permute.xlu0 0
        %440 = vperm.xlu0 %439, %v418
        %v441 = vpop.permute.xlu0 %440
        %442 = vset.pattern.permute.xlu0 0
        %443 = vperm.xlu0 %442, %v419
        %v444 = vpop.permute.xlu0 %443
        %445 = vset.pattern.permute.xlu0 0
        %446 = vperm.xlu0 %445, %v420
        %v447 = vpop.permute.xlu0 %446
        %448 = vset.pattern.permute.xlu0 0
        %449 = vperm.xlu0 %448, %v421
        %v450 = vpop.permute.xlu0 %449
        %451 = vset.pattern.permute.xlu0 0
        %452 = vperm.xlu0 %451, %v422
        %v453 = vpop.permute.xlu0 %452
        %454 = vset.pattern.permute.xlu0 0
        %455 = vperm.xlu0 %454, %v423
        %v456 = vpop.permute.xlu0 %455
        %457 = vset.pattern.permute.xlu0 0
        %458 = vperm.xlu0 %457, %v424
        %v459 = vpop.permute.xlu0 %458
        %460 = vset.pattern.permute.xlu0 0
        %461 = vperm.xlu0 %460, %v425
        %v462 = vpop.permute.xlu0 %461
        %463 = vset.pattern.permute.xlu0 0
        %464 = vperm.xlu0 %463, %v426
        %v465 = vpop.permute.xlu0 %464
        %466 = vset.pattern.permute.xlu0 0
        %467 = vperm.xlu0 %466, %v427
        %v468 = vpop.permute.xlu0 %467
        %469 = vset.pattern.permute.xlu0 0
        %470 = vperm.xlu0 %469, %v428
        %v471 = vpop.permute.xlu0 %470
        %472 = vset.pattern.permute.xlu0 0
        %473 = vperm.xlu0 %472, %v429
        %v474 = vpop.permute.xlu0 %473
        %475 = vset.pattern.permute.xlu0 0
        %476 = vperm.xlu0 %475, %v430
        %v477 = vpop.permute.xlu0 %476
        %478 = vset.pattern.permute.xlu0 0
        %479 = vperm.xlu0 %478, %v431
        %v480 = vpop.permute.xlu0 %479
        %481 = vset.pattern.permute.xlu0 0
        %482 = vperm.xlu0 %481, %v432
        %v483 = vpop.permute.xlu0 %482
        %484 = vset.pattern.permute.xlu0 0
        %485 = vperm.xlu0 %484, %v433
        %v486 = vpop.permute.xlu0 %485
        %vm487 = vcmp.eq.s32.totalorder %v435, %v441
        %vm488 = vcmp.eq.s32.totalorder %v436, %v441
        %vm489 = vcmp.eq.s32.totalorder %v437, %v441
        %vm490 = vcmp.eq.s32.totalorder %v438, %v441
        %vm491 = vcmp.eq.s32.totalorder %v435, %v444
        %vm492 = vcmp.eq.s32.totalorder %v436, %v444
        %vm493 = vcmp.eq.s32.totalorder %v437, %v444
        %vm494 = vcmp.eq.s32.totalorder %v438, %v444
        %vm495 = vcmp.eq.s32.totalorder %v435, %v447
        %vm496 = vcmp.eq.s32.totalorder %v436, %v447
        %vm497 = vcmp.eq.s32.totalorder %v437, %v447
        %vm498 = vcmp.eq.s32.totalorder %v438, %v447
        %vm499 = vcmp.eq.s32.totalorder %v435, %v450
        %vm500 = vcmp.eq.s32.totalorder %v436, %v450
        %vm501 = vcmp.eq.s32.totalorder %v437, %v450
        %vm502 = vcmp.eq.s32.totalorder %v438, %v450
        %vm503 = vcmp.eq.s32.totalorder %v435, %v453
        %vm504 = vcmp.eq.s32.totalorder %v436, %v453
        %vm505 = vcmp.eq.s32.totalorder %v437, %v453
        %vm506 = vcmp.eq.s32.totalorder %v438, %v453
        %vm507 = vcmp.eq.s32.totalorder %v435, %v456
        %vm508 = vcmp.eq.s32.totalorder %v436, %v456
        %vm509 = vcmp.eq.s32.totalorder %v437, %v456
        %vm510 = vcmp.eq.s32.totalorder %v438, %v456
        %vm511 = vcmp.eq.s32.totalorder %v435, %v459
        %vm512 = vcmp.eq.s32.totalorder %v436, %v459
        %vm513 = vcmp.eq.s32.totalorder %v437, %v459
        %vm514 = vcmp.eq.s32.totalorder %v438, %v459
        %vm515 = vcmp.eq.s32.totalorder %v435, %v462
        %vm516 = vcmp.eq.s32.totalorder %v436, %v462
        %vm517 = vcmp.eq.s32.totalorder %v437, %v462
        %vm518 = vcmp.eq.s32.totalorder %v438, %v462
        %vm519 = vcmp.eq.s32.totalorder %v435, %v465
        %vm520 = vcmp.eq.s32.totalorder %v436, %v465
        %vm521 = vcmp.eq.s32.totalorder %v437, %v465
        %vm522 = vcmp.eq.s32.totalorder %v438, %v465
        %vm523 = vcmp.eq.s32.totalorder %v435, %v468
        %vm524 = vcmp.eq.s32.totalorder %v436, %v468
        %vm525 = vcmp.eq.s32.totalorder %v437, %v468
        %vm526 = vcmp.eq.s32.totalorder %v438, %v468
        %vm527 = vcmp.eq.s32.totalorder %v435, %v471
        %vm528 = vcmp.eq.s32.totalorder %v436, %v471
        %vm529 = vcmp.eq.s32.totalorder %v437, %v471
        %vm530 = vcmp.eq.s32.totalorder %v438, %v471
        %vm531 = vcmp.eq.s32.totalorder %v435, %v474
        %vm532 = vcmp.eq.s32.totalorder %v436, %v474
        %vm533 = vcmp.eq.s32.totalorder %v437, %v474
        %vm534 = vcmp.eq.s32.totalorder %v438, %v474
        %vm535 = vcmp.eq.s32.totalorder %v435, %v477
        %vm536 = vcmp.eq.s32.totalorder %v436, %v477
        %vm537 = vcmp.eq.s32.totalorder %v437, %v477
        %vm538 = vcmp.eq.s32.totalorder %v438, %v477
        %vm539 = vcmp.eq.s32.totalorder %v435, %v480
        %vm540 = vcmp.eq.s32.totalorder %v436, %v480
        %vm541 = vcmp.eq.s32.totalorder %v437, %v480
        %vm542 = vcmp.eq.s32.totalorder %v438, %v480
        %vm543 = vcmp.eq.s32.totalorder %v435, %v483
        %vm544 = vcmp.eq.s32.totalorder %v436, %v483
        %vm545 = vcmp.eq.s32.totalorder %v437, %v483
        %vm546 = vcmp.eq.s32.totalorder %v438, %v483
        %vm547 = vcmp.eq.s32.totalorder %v435, %v486
        %vm548 = vcmp.eq.s32.totalorder %v436, %v486
        %vm549 = vcmp.eq.s32.totalorder %v437, %v486
        %vm550 = vcmp.eq.s32.totalorder %v438, %v486
        %v551 = vsel %vm487, 1, 0
        %v552 = vsel %vm488, 1, 0
        %v553 = vsel %vm489, 1, 0
        %v554 = vsel %vm490, 1, 0
        %v555 = vsel %vm491, 1, 0
        %v556 = vsel %vm492, 1, 0
        %v557 = vsel %vm493, 1, 0
        %v558 = vsel %vm494, 1, 0
        %v559 = vsel %vm495, 1, 0
        %v560 = vsel %vm496, 1, 0
        %v561 = vsel %vm497, 1, 0
        %v562 = vsel %vm498, 1, 0
        %v563 = vsel %vm499, 1, 0
        %v564 = vsel %vm500, 1, 0
        %v565 = vsel %vm501, 1, 0
        %v566 = vsel %vm502, 1, 0
        %v567 = vsel %vm503, 1, 0
        %v568 = vsel %vm504, 1, 0
        %v569 = vsel %vm505, 1, 0
        %v570 = vsel %vm506, 1, 0
        %v571 = vsel %vm507, 1, 0
        %v572 = vsel %vm508, 1, 0
        %v573 = vsel %vm509, 1, 0
        %v574 = vsel %vm510, 1, 0
        %v575 = vsel %vm511, 1, 0
        %v576 = vsel %vm512, 1, 0
        %v577 = vsel %vm513, 1, 0
        %v578 = vsel %vm514, 1, 0
        %v579 = vsel %vm515, 1, 0
        %v580 = vsel %vm516, 1, 0
        %v581 = vsel %vm517, 1, 0
        %v582 = vsel %vm518, 1, 0
        %v583 = vsel %vm519, 1, 0
        %v584 = vsel %vm520, 1, 0
        %v585 = vsel %vm521, 1, 0
        %v586 = vsel %vm522, 1, 0
        %v587 = vsel %vm523, 1, 0
        %v588 = vsel %vm524, 1, 0
        %v589 = vsel %vm525, 1, 0
        %v590 = vsel %vm526, 1, 0
        %v591 = vsel %vm527, 1, 0
        %v592 = vsel %vm528, 1, 0
        %v593 = vsel %vm529, 1, 0
        %v594 = vsel %vm530, 1, 0
        %v595 = vsel %vm531, 1, 0
        %v596 = vsel %vm532, 1, 0
        %v597 = vsel %vm533, 1, 0
        %v598 = vsel %vm534, 1, 0
        %v599 = vsel %vm535, 1, 0
        %v600 = vsel %vm536, 1, 0
        %v601 = vsel %vm537, 1, 0
        %v602 = vsel %vm538, 1, 0
        %v603 = vsel %vm539, 1, 0
        %v604 = vsel %vm540, 1, 0
        %v605 = vsel %vm541, 1, 0
        %v606 = vsel %vm542, 1, 0
        %v607 = vsel %vm543, 1, 0
        %v608 = vsel %vm544, 1, 0
        %v609 = vsel %vm545, 1, 0
        %v610 = vsel %vm546, 1, 0
        %v611 = vsel %vm547, 1, 0
        %v612 = vsel %vm548, 1, 0
        %v613 = vsel %vm549, 1, 0
        %v614 = vsel %vm550, 1, 0
        %v615 = vcvt.s32.f32 %v551
        %v616 = vcvt.s32.f32 %v552
        %v617 = vcvt.s32.f32 %v553
        %v618 = vcvt.s32.f32 %v554
        %v619 = vcvt.s32.f32 %v555
        %v620 = vcvt.s32.f32 %v556
        %v621 = vcvt.s32.f32 %v557
        %v622 = vcvt.s32.f32 %v558
        %v623 = vcvt.s32.f32 %v559
        %v624 = vcvt.s32.f32 %v560
        %v625 = vcvt.s32.f32 %v561
        %v626 = vcvt.s32.f32 %v562
        %v627 = vcvt.s32.f32 %v563
        %v628 = vcvt.s32.f32 %v564
        %v629 = vcvt.s32.f32 %v565
        %v630 = vcvt.s32.f32 %v566
        %v631 = vcvt.s32.f32 %v567
        %v632 = vcvt.s32.f32 %v568
        %v633 = vcvt.s32.f32 %v569
        %v634 = vcvt.s32.f32 %v570
        %v635 = vcvt.s32.f32 %v571
        %v636 = vcvt.s32.f32 %v572
        %v637 = vcvt.s32.f32 %v573
        %v638 = vcvt.s32.f32 %v574
        %v639 = vcvt.s32.f32 %v575
        %v640 = vcvt.s32.f32 %v576
        %v641 = vcvt.s32.f32 %v577
        %v642 = vcvt.s32.f32 %v578
        %v643 = vcvt.s32.f32 %v579
        %v644 = vcvt.s32.f32 %v580
        %v645 = vcvt.s32.f32 %v581
        %v646 = vcvt.s32.f32 %v582
        %v647 = vcvt.s32.f32 %v583
        %v648 = vcvt.s32.f32 %v584
        %v649 = vcvt.s32.f32 %v585
        %v650 = vcvt.s32.f32 %v586
        %v651 = vcvt.s32.f32 %v587
        %v652 = vcvt.s32.f32 %v588
        %v653 = vcvt.s32.f32 %v589
        %v654 = vcvt.s32.f32 %v590
        %v655 = vcvt.s32.f32 %v591
        %v656 = vcvt.s32.f32 %v592
        %v657 = vcvt.s32.f32 %v593
        %v658 = vcvt.s32.f32 %v594
        %v659 = vcvt.s32.f32 %v595
        %v660 = vcvt.s32.f32 %v596
        %v661 = vcvt.s32.f32 %v597
        %v662 = vcvt.s32.f32 %v598
        %v663 = vcvt.s32.f32 %v599
        %v664 = vcvt.s32.f32 %v600
        %v665 = vcvt.s32.f32 %v601
        %v666 = vcvt.s32.f32 %v602
        %v667 = vcvt.s32.f32 %v603
        %v668 = vcvt.s32.f32 %v604
        %v669 = vcvt.s32.f32 %v605
        %v670 = vcvt.s32.f32 %v606
        %v671 = vcvt.s32.f32 %v607
        %v672 = vcvt.s32.f32 %v608
        %v673 = vcvt.s32.f32 %v609
        %v674 = vcvt.s32.f32 %v610
        %v675 = vcvt.s32.f32 %v611
        %v676 = vcvt.s32.f32 %v612
        %v677 = vcvt.s32.f32 %v613
        %v678 = vcvt.s32.f32 %v614
        %v679 = vld [vmem:[%s3] ss:$8 sm:$0xf]
        %v681 = vlaneseq
        %v682 = vshrl.u32 %v681, 7
        %v683 = vsub.s32 0, %v682
        %v684 = vrot.slane %v679, %v683
        %v685 = vlaneseq
        %v686 = vshrl.u32 %v685, 7
        %v687 = vsub.s32 1, %v686
        %v688 = vrot.slane %v679, %v687
        %v689 = vlaneseq
        %v690 = vshrl.u32 %v689, 7
        %v691 = vsub.s32 2, %v690
        %v692 = vrot.slane %v679, %v691
        %v693 = vlaneseq
        %v694 = vshrl.u32 %v693, 7
        %v695 = vsub.s32 3, %v694
        %v696 = vrot.slane %v679, %v695
        %v701 = vmul.f32 %v615, %v684
        %v702 = vmul.f32 %v616, %v688
        %v703 = vmul.f32 %v617, %v692
        %v704 = vmul.f32 %v618, %v696
        %v705 = vmul.f32 %v619, %v684
        %v706 = vmul.f32 %v620, %v688
        %v707 = vmul.f32 %v621, %v692
        %v708 = vmul.f32 %v622, %v696
        %v709 = vmul.f32 %v623, %v684
        %v710 = vmul.f32 %v624, %v688
        %v711 = vmul.f32 %v625, %v692
        %v712 = vmul.f32 %v626, %v696
        %v713 = vmul.f32 %v627, %v684
        %v714 = vmul.f32 %v628, %v688
        %v715 = vmul.f32 %v629, %v692
        %v716 = vmul.f32 %v630, %v696
        %v717 = vmul.f32 %v631, %v684
        %v718 = vmul.f32 %v632, %v688
        %v719 = vmul.f32 %v633, %v692
        %v720 = vmul.f32 %v634, %v696
        %v721 = vmul.f32 %v635, %v684
        %v722 = vmul.f32 %v636, %v688
        %v723 = vmul.f32 %v637, %v692
        %v724 = vmul.f32 %v638, %v696
        %v725 = vmul.f32 %v639, %v684
        %v726 = vmul.f32 %v640, %v688
        %v727 = vmul.f32 %v641, %v692
        %v728 = vmul.f32 %v642, %v696
        %v729 = vmul.f32 %v643, %v684
        %v730 = vmul.f32 %v644, %v688
        %v731 = vmul.f32 %v645, %v692
        %v732 = vmul.f32 %v646, %v696
        %v733 = vmul.f32 %v647, %v684
        %v734 = vmul.f32 %v648, %v688
        %v735 = vmul.f32 %v649, %v692
        %v736 = vmul.f32 %v650, %v696
        %v737 = vmul.f32 %v651, %v684
        %v738 = vmul.f32 %v652, %v688
        %v739 = vmul.f32 %v653, %v692
        %v740 = vmul.f32 %v654, %v696
        %v741 = vmul.f32 %v655, %v684
        %v742 = vmul.f32 %v656, %v688
        %v743 = vmul.f32 %v657, %v692
        %v744 = vmul.f32 %v658, %v696
        %v745 = vmul.f32 %v659, %v684
        %v746 = vmul.f32 %v660, %v688
        %v747 = vmul.f32 %v661, %v692
        %v748 = vmul.f32 %v662, %v696
        %v749 = vmul.f32 %v663, %v684
        %v750 = vmul.f32 %v664, %v688
        %v751 = vmul.f32 %v665, %v692
        %v752 = vmul.f32 %v666, %v696
        %v753 = vmul.f32 %v667, %v684
        %v754 = vmul.f32 %v668, %v688
        %v755 = vmul.f32 %v669, %v692
        %v756 = vmul.f32 %v670, %v696
        %v757 = vmul.f32 %v671, %v684
        %v758 = vmul.f32 %v672, %v688
        %v759 = vmul.f32 %v673, %v692
        %v760 = vmul.f32 %v674, %v696
        %v761 = vmul.f32 %v675, %v684
        %v762 = vmul.f32 %v676, %v688
        %v763 = vmul.f32 %v677, %v692
        %v764 = vmul.f32 %v678, %v696
        %v765 = vadd.f32 %v701, %v702
        %v766 = vadd.f32 %v765, %v703
        %v767 = vadd.f32 %v766, %v704
        %768 = vadd.xlane.f32.xlu0 %v767
        %v769 = vpop.xlane.xlu0 %768
        %v770 = vadd.f32 %v705, %v706
        %v771 = vadd.f32 %v770, %v707
        %v772 = vadd.f32 %v771, %v708
        %773 = vadd.xlane.f32.xlu0 %v772
        %v774 = vpop.xlane.xlu0 %773
        %v775 = vadd.f32 %v709, %v710
        %v776 = vadd.f32 %v775, %v711
        %v777 = vadd.f32 %v776, %v712
        %778 = vadd.xlane.f32.xlu0 %v777
        %v779 = vpop.xlane.xlu0 %778
        %v780 = vadd.f32 %v713, %v714
        %v781 = vadd.f32 %v780, %v715
        %v782 = vadd.f32 %v781, %v716
        %783 = vadd.xlane.f32.xlu0 %v782
        %v784 = vpop.xlane.xlu0 %783
        %v785 = vadd.f32 %v717, %v718
        %v786 = vadd.f32 %v785, %v719
        %v787 = vadd.f32 %v786, %v720
        %788 = vadd.xlane.f32.xlu0 %v787
        %v789 = vpop.xlane.xlu0 %788
        %v790 = vadd.f32 %v721, %v722
        %v791 = vadd.f32 %v790, %v723
        %v792 = vadd.f32 %v791, %v724
        %793 = vadd.xlane.f32.xlu0 %v792
        %v794 = vpop.xlane.xlu0 %793
        %v795 = vadd.f32 %v725, %v726
        %v796 = vadd.f32 %v795, %v727
        %v797 = vadd.f32 %v796, %v728
        %798 = vadd.xlane.f32.xlu0 %v797
        %v799 = vpop.xlane.xlu0 %798
        %v800 = vadd.f32 %v729, %v730
        %v801 = vadd.f32 %v800, %v731
        %v802 = vadd.f32 %v801, %v732
        %803 = vadd.xlane.f32.xlu0 %v802
        %v804 = vpop.xlane.xlu0 %803
        %v805 = vadd.f32 %v733, %v734
        %v806 = vadd.f32 %v805, %v735
        %v807 = vadd.f32 %v806, %v736
        %808 = vadd.xlane.f32.xlu0 %v807
        %v809 = vpop.xlane.xlu0 %808
        %v810 = vadd.f32 %v737, %v738
        %v811 = vadd.f32 %v810, %v739
        %v812 = vadd.f32 %v811, %v740
        %813 = vadd.xlane.f32.xlu0 %v812
        %v814 = vpop.xlane.xlu0 %813
        %v815 = vadd.f32 %v741, %v742
        %v816 = vadd.f32 %v815, %v743
        %v817 = vadd.f32 %v816, %v744
        %818 = vadd.xlane.f32.xlu0 %v817
        %v819 = vpop.xlane.xlu0 %818
        %v820 = vadd.f32 %v745, %v746
        %v821 = vadd.f32 %v820, %v747
        %v822 = vadd.f32 %v821, %v748
        %823 = vadd.xlane.f32.xlu0 %v822
        %v824 = vpop.xlane.xlu0 %823
        %v825 = vadd.f32 %v749, %v750
        %v826 = vadd.f32 %v825, %v751
        %v827 = vadd.f32 %v826, %v752
        %828 = vadd.xlane.f32.xlu0 %v827
        %v829 = vpop.xlane.xlu0 %828
        %v830 = vadd.f32 %v753, %v754
        %v831 = vadd.f32 %v830, %v755
        %v832 = vadd.f32 %v831, %v756
        %833 = vadd.xlane.f32.xlu0 %v832
        %v834 = vpop.xlane.xlu0 %833
        %v835 = vadd.f32 %v757, %v758
        %v836 = vadd.f32 %v835, %v759
        %v837 = vadd.f32 %v836, %v760
        %838 = vadd.xlane.f32.xlu0 %v837
        %v839 = vpop.xlane.xlu0 %838
        %v840 = vadd.f32 %v761, %v762
        %v841 = vadd.f32 %v840, %v763
        %v842 = vadd.f32 %v841, %v764
        %843 = vadd.xlane.f32.xlu0 %v842
        %v844 = vpop.xlane.xlu0 %843
        %s845 = scalar_lea.vmem %s3, 1
        %v846 = vld [vmem:[%s845] ss:$8 sm:$0xf]
        %v848 = vlaneseq
        %v849 = vshrl.u32 %v848, 7
        %v850 = vsub.s32 0, %v849
        %v851 = vrot.slane %v846, %v850
        %v852 = vlaneseq
        %v853 = vshrl.u32 %v852, 7
        %v854 = vsub.s32 1, %v853
        %v855 = vrot.slane %v846, %v854
        %v856 = vlaneseq
        %v857 = vshrl.u32 %v856, 7
        %v858 = vsub.s32 2, %v857
        %v859 = vrot.slane %v846, %v858
        %v860 = vlaneseq
        %v861 = vshrl.u32 %v860, 7
        %v862 = vsub.s32 3, %v861
        %v863 = vrot.slane %v846, %v862
        %v868 = vmul.f32 %v615, %v851
        %v869 = vmul.f32 %v616, %v855
        %v870 = vmul.f32 %v617, %v859
        %v871 = vmul.f32 %v618, %v863
        %v872 = vmul.f32 %v619, %v851
        %v873 = vmul.f32 %v620, %v855
        %v874 = vmul.f32 %v621, %v859
        %v875 = vmul.f32 %v622, %v863
        %v876 = vmul.f32 %v623, %v851
        %v877 = vmul.f32 %v624, %v855
        %v878 = vmul.f32 %v625, %v859
        %v879 = vmul.f32 %v626, %v863
        %v880 = vmul.f32 %v627, %v851
        %v881 = vmul.f32 %v628, %v855
        %v882 = vmul.f32 %v629, %v859
        %v883 = vmul.f32 %v630, %v863
        %v884 = vmul.f32 %v631, %v851
        %v885 = vmul.f32 %v632, %v855
        %v886 = vmul.f32 %v633, %v859
        %v887 = vmul.f32 %v634, %v863
        %v888 = vmul.f32 %v635, %v851
        %v889 = vmul.f32 %v636, %v855
        %v890 = vmul.f32 %v637, %v859
        %v891 = vmul.f32 %v638, %v863
        %v892 = vmul.f32 %v639, %v851
        %v893 = vmul.f32 %v640, %v855
        %v894 = vmul.f32 %v641, %v859
        %v895 = vmul.f32 %v642, %v863
        %v896 = vmul.f32 %v643, %v851
        %v897 = vmul.f32 %v644, %v855
        %v898 = vmul.f32 %v645, %v859
        %v899 = vmul.f32 %v646, %v863
        %v900 = vmul.f32 %v647, %v851
        %v901 = vmul.f32 %v648, %v855
        %v902 = vmul.f32 %v649, %v859
        %v903 = vmul.f32 %v650, %v863
        %v904 = vmul.f32 %v651, %v851
        %v905 = vmul.f32 %v652, %v855
        %v906 = vmul.f32 %v653, %v859
        %v907 = vmul.f32 %v654, %v863
        %v908 = vmul.f32 %v655, %v851
        %v909 = vmul.f32 %v656, %v855
        %v910 = vmul.f32 %v657, %v859
        %v911 = vmul.f32 %v658, %v863
        %v912 = vmul.f32 %v659, %v851
        %v913 = vmul.f32 %v660, %v855
        %v914 = vmul.f32 %v661, %v859
        %v915 = vmul.f32 %v662, %v863
        %v916 = vmul.f32 %v663, %v851
        %v917 = vmul.f32 %v664, %v855
        %v918 = vmul.f32 %v665, %v859
        %v919 = vmul.f32 %v666, %v863
        %v920 = vmul.f32 %v667, %v851
        %v921 = vmul.f32 %v668, %v855
        %v922 = vmul.f32 %v669, %v859
        %v923 = vmul.f32 %v670, %v863
        %v924 = vmul.f32 %v671, %v851
        %v925 = vmul.f32 %v672, %v855
        %v926 = vmul.f32 %v673, %v859
        %v927 = vmul.f32 %v674, %v863
        %v928 = vmul.f32 %v675, %v851
        %v929 = vmul.f32 %v676, %v855
        %v930 = vmul.f32 %v677, %v859
        %v931 = vmul.f32 %v678, %v863
        %v932 = vadd.f32 %v868, %v869
        %v933 = vadd.f32 %v932, %v870
        %v934 = vadd.f32 %v933, %v871
        %935 = vadd.xlane.f32.xlu0 %v934
        %v936 = vpop.xlane.xlu0 %935
        %v937 = vadd.f32 %v872, %v873
        %v938 = vadd.f32 %v937, %v874
        %v939 = vadd.f32 %v938, %v875
        %940 = vadd.xlane.f32.xlu0 %v939
        %v941 = vpop.xlane.xlu0 %940
        %v942 = vadd.f32 %v876, %v877
        %v943 = vadd.f32 %v942, %v878
        %v944 = vadd.f32 %v943, %v879
        %945 = vadd.xlane.f32.xlu0 %v944
        %v946 = vpop.xlane.xlu0 %945
        %v947 = vadd.f32 %v880, %v881
        %v948 = vadd.f32 %v947, %v882
        %v949 = vadd.f32 %v948, %v883
        %950 = vadd.xlane.f32.xlu0 %v949
        %v951 = vpop.xlane.xlu0 %950
        %v952 = vadd.f32 %v884, %v885
        %v953 = vadd.f32 %v952, %v886
        %v954 = vadd.f32 %v953, %v887
        %955 = vadd.xlane.f32.xlu0 %v954
        %v956 = vpop.xlane.xlu0 %955
        %v957 = vadd.f32 %v888, %v889
        %v958 = vadd.f32 %v957, %v890
        %v959 = vadd.f32 %v958, %v891
        %960 = vadd.xlane.f32.xlu0 %v959
        %v961 = vpop.xlane.xlu0 %960
        %v962 = vadd.f32 %v892, %v893
        %v963 = vadd.f32 %v962, %v894
        %v964 = vadd.f32 %v963, %v895
        %965 = vadd.xlane.f32.xlu0 %v964
        %v966 = vpop.xlane.xlu0 %965
        %v967 = vadd.f32 %v896, %v897
        %v968 = vadd.f32 %v967, %v898
        %v969 = vadd.f32 %v968, %v899
        %970 = vadd.xlane.f32.xlu0 %v969
        %v971 = vpop.xlane.xlu0 %970
        %v972 = vadd.f32 %v900, %v901
        %v973 = vadd.f32 %v972, %v902
        %v974 = vadd.f32 %v973, %v903
        %975 = vadd.xlane.f32.xlu0 %v974
        %v976 = vpop.xlane.xlu0 %975
        %v977 = vadd.f32 %v904, %v905
        %v978 = vadd.f32 %v977, %v906
        %v979 = vadd.f32 %v978, %v907
        %980 = vadd.xlane.f32.xlu0 %v979
        %v981 = vpop.xlane.xlu0 %980
        %v982 = vadd.f32 %v908, %v909
        %v983 = vadd.f32 %v982, %v910
        %v984 = vadd.f32 %v983, %v911
        %985 = vadd.xlane.f32.xlu0 %v984
        %v986 = vpop.xlane.xlu0 %985
        %v987 = vadd.f32 %v912, %v913
        %v988 = vadd.f32 %v987, %v914
        %v989 = vadd.f32 %v988, %v915
        %990 = vadd.xlane.f32.xlu0 %v989
        %v991 = vpop.xlane.xlu0 %990
        %v992 = vadd.f32 %v916, %v917
        %v993 = vadd.f32 %v992, %v918
        %v994 = vadd.f32 %v993, %v919
        %995 = vadd.xlane.f32.xlu0 %v994
        %v996 = vpop.xlane.xlu0 %995
        %v997 = vadd.f32 %v920, %v921
        %v998 = vadd.f32 %v997, %v922
        %v999 = vadd.f32 %v998, %v923
        %1000 = vadd.xlane.f32.xlu0 %v999
        %v1001 = vpop.xlane.xlu0 %1000
        %v1002 = vadd.f32 %v924, %v925
        %v1003 = vadd.f32 %v1002, %v926
        %v1004 = vadd.f32 %v1003, %v927
        %1005 = vadd.xlane.f32.xlu0 %v1004
        %v1006 = vpop.xlane.xlu0 %1005
        %v1007 = vadd.f32 %v928, %v929
        %v1008 = vadd.f32 %v1007, %v930
        %v1009 = vadd.f32 %v1008, %v931
        %1010 = vadd.xlane.f32.xlu0 %v1009
        %v1011 = vpop.xlane.xlu0 %1010
        %v1012 = vcvt.s32.f32 %v418
        %v1013 = vcvt.s32.f32 %v419
        %v1014 = vcvt.s32.f32 %v420
        %v1015 = vcvt.s32.f32 %v421
        %v1016 = vcvt.s32.f32 %v422
        %v1017 = vcvt.s32.f32 %v423
        %v1018 = vcvt.s32.f32 %v424
        %v1019 = vcvt.s32.f32 %v425
        %v1020 = vcvt.s32.f32 %v426
        %v1021 = vcvt.s32.f32 %v427
        %v1022 = vcvt.s32.f32 %v428
        %v1023 = vcvt.s32.f32 %v429
        %v1024 = vcvt.s32.f32 %v430
        %v1025 = vcvt.s32.f32 %v431
        %v1026 = vcvt.s32.f32 %v432
        %v1027 = vcvt.s32.f32 %v433
        %v1028 = vmul.f32 %v1012, 0.0025
        %v1029 = vmul.f32 %v1013, 0.0025
        %v1030 = vmul.f32 %v1014, 0.0025
        %v1031 = vmul.f32 %v1015, 0.0025
        %v1032 = vmul.f32 %v1016, 0.0025
        %v1033 = vmul.f32 %v1017, 0.0025
        %v1034 = vmul.f32 %v1018, 0.0025
        %v1035 = vmul.f32 %v1019, 0.0025
        %v1036 = vmul.f32 %v1020, 0.0025
        %v1037 = vmul.f32 %v1021, 0.0025
        %v1038 = vmul.f32 %v1022, 0.0025
        %v1039 = vmul.f32 %v1023, 0.0025
        %v1040 = vmul.f32 %v1024, 0.0025
        %v1041 = vmul.f32 %v1025, 0.0025
        %v1042 = vmul.f32 %v1026, 0.0025
        %v1043 = vmul.f32 %v1027, 0.0025
        %v1044 = vmul.f32 %v769, %v386
        %v1045 = vmul.f32 %v774, %v387
        %v1046 = vmul.f32 %v779, %v388
        %v1047 = vmul.f32 %v784, %v389
        %v1048 = vmul.f32 %v789, %v390
        %v1049 = vmul.f32 %v794, %v391
        %v1050 = vmul.f32 %v799, %v392
        %v1051 = vmul.f32 %v804, %v393
        %v1052 = vmul.f32 %v809, %v394
        %v1053 = vmul.f32 %v814, %v395
        %v1054 = vmul.f32 %v819, %v396
        %v1055 = vmul.f32 %v824, %v397
        %v1056 = vmul.f32 %v829, %v398
        %v1057 = vmul.f32 %v834, %v399
        %v1058 = vmul.f32 %v839, %v400
        %v1059 = vmul.f32 %v844, %v401
        %v1060 = vmul.f32 %v936, %v402
        %v1061 = vmul.f32 %v941, %v403
        %v1062 = vmul.f32 %v946, %v404
        %v1063 = vmul.f32 %v951, %v405
        %v1064 = vmul.f32 %v956, %v406
        %v1065 = vmul.f32 %v961, %v407
        %v1066 = vmul.f32 %v966, %v408
        %v1067 = vmul.f32 %v971, %v409
        %v1068 = vmul.f32 %v976, %v410
        %v1069 = vmul.f32 %v981, %v411
        %v1070 = vmul.f32 %v986, %v412
        %v1071 = vmul.f32 %v991, %v413
        %v1072 = vmul.f32 %v996, %v414
        %v1073 = vmul.f32 %v1001, %v415
        %v1074 = vmul.f32 %v1006, %v416
        %v1075 = vmul.f32 %v1011, %v417
        %v1076 = vadd.f32 %v1044, %v1060
        %v1077 = vadd.f32 %v1045, %v1061
        %v1078 = vadd.f32 %v1046, %v1062
        %v1079 = vadd.f32 %v1047, %v1063
        %v1080 = vadd.f32 %v1048, %v1064
        %v1081 = vadd.f32 %v1049, %v1065
        %v1082 = vadd.f32 %v1050, %v1066
        %v1083 = vadd.f32 %v1051, %v1067
        %v1084 = vadd.f32 %v1052, %v1068
        %v1085 = vadd.f32 %v1053, %v1069
        %v1086 = vadd.f32 %v1054, %v1070
        %v1087 = vadd.f32 %v1055, %v1071
        %v1088 = vadd.f32 %v1056, %v1072
        %v1089 = vadd.f32 %v1057, %v1073
        %v1090 = vadd.f32 %v1058, %v1074
        %v1091 = vadd.f32 %v1059, %v1075
        %v1092 = vpack.c.bf16 %v1077, %v1076
        %v1093 = vpack.c.bf16 %v1079, %v1078
        %v1094 = vpack.c.bf16 %v1081, %v1080
        %v1095 = vpack.c.bf16 %v1083, %v1082
        %v1096 = vpack.c.bf16 %v1085, %v1084
        %v1097 = vpack.c.bf16 %v1087, %v1086
        %v1098 = vpack.c.bf16 %v1089, %v1088
        %v1099 = vpack.c.bf16 %v1091, %v1090
        %v1100 = vld [vmem:[%s4] sm:$0xff]
        %v1101 = vld [vmem:[%s4 + $0x8] sm:$0xff]
        %v1102 = vpack.c.bf16 %v1101, %v1100
        %v1103 = vld [vmem:[%s5] sm:$0x1]
        %v1105 = vlaneseq
        %v1106 = vshrl.u32 %v1105, 7
        %v1107 = vsub.s32 0, %v1106
        %v1108 = vrot.slane %v1103, %v1107
        %vm1110 = vcmask 130048
        %v1112 = vsel %vm1110, %v1092, 0
        %v1115 = vsel %vm1110, %v1093, 0
        %v1118 = vsel %vm1110, %v1094, 0
        %v1121 = vsel %vm1110, %v1095, 0
        %v1124 = vsel %vm1110, %v1096, 0
        %v1127 = vsel %vm1110, %v1097, 0
        %v1130 = vsel %vm1110, %v1098, 0
        %v1133 = vsel %vm1110, %v1099, 0
        %1135 = vmatprep.subr.bf16.mxu0 0
        %1136 = vmatpush1.bf16.msra.mxu0 %v1102
        %1137 = vmatprep.subr.bf16.mxu0 0
        %1138 = vmatpush1.bf16.msra.mxu0 0
        %1139 = vmatprep.subr.bf16.mxu0 0
        %1140 = vmatpush1.bf16.msra.mxu0 0
        %1141 = vmatprep.subr.bf16.mxu0 0
        %1142 = vmatpush1.bf16.msra.mxu0 0
        %1143 = vmatprep.subr.bf16.mxu0 0
        %1144 = vmatpush1.bf16.msra.mxu0 0
        %1145 = vmatprep.subr.bf16.mxu0 0
        %1146 = vmatpush1.bf16.msra.mxu0 0
        %1147 = vmatprep.subr.bf16.mxu0 0
        %1148 = vmatpush1.bf16.msra.mxu0 0
        %1149 = vmatprep.subr.bf16.mxu0 0
        %1150 = vmatpush1.bf16.msra.mxu0 0
        %1151 = vmatprep.subr.bf16.mxu0 0
        %1152 = vmatpush1.bf16.msra.mxu0 0
        %1153 = vmatprep.subr.bf16.mxu0 0
        %1154 = vmatpush1.bf16.msra.mxu0 0
        %1155 = vmatprep.subr.bf16.mxu0 0
        %1156 = vmatpush1.bf16.msra.mxu0 0
        %1157 = vmatprep.subr.bf16.mxu0 0
        %1158 = vmatpush1.bf16.msra.mxu0 0
        %1159 = vmatprep.subr.bf16.mxu0 0
        %1160 = vmatpush1.bf16.msra.mxu0 0
        %1161 = vmatprep.subr.bf16.mxu0 0
        %1162 = vmatpush1.bf16.msra.mxu0 0
        %1163 = vmatprep.subr.bf16.mxu0 0
        %1164 = vmatpush1.bf16.msra.mxu0 0
        %1165 = vmatprep.subr.bf16.mxu0 0
        %1166 = vmatpush1.bf16.msra.mxu0 0
        %1167 = vmatprep.mubr.bf16.mxu0 0
        %1168 = vmatmul.mubr.bf16.gmra.mrb[0].mxu0 %v1112
        %v1169 = vpop.f32.mrb[0].mxu0
        %v1170 = vadd.f32 %v1108, %v1169
        %v1171 = vpop.f32.mrb[0].mxu0
        %v1172 = vpop.f32.mrb[0].mxu0
        %v1173 = vadd.f32 %v1108, %v1172
        %v1174 = vpop.f32.mrb[0].mxu0
        %1175 = vmatprep.mubr.bf16.mxu0 0
        %1176 = vmatmul.mubr.bf16.gmra.mrb[0].mxu0 %v1115
        %v1177 = vpop.f32.mrb[0].mxu0
        %v1178 = vadd.f32 %v1108, %v1177
        %v1179 = vpop.f32.mrb[0].mxu0
        %v1180 = vpop.f32.mrb[0].mxu0
        %v1181 = vadd.f32 %v1108, %v1180
        %v1182 = vpop.f32.mrb[0].mxu0
        %1183 = vmatprep.mubr.bf16.mxu0 0
        %1184 = vmatmul.mubr.bf16.gmra.mrb[0].mxu0 %v1118
        %v1185 = vpop.f32.mrb[0].mxu0
        %v1186 = vadd.f32 %v1108, %v1185
        %v1187 = vpop.f32.mrb[0].mxu0
        %v1188 = vpop.f32.mrb[0].mxu0
        %v1189 = vadd.f32 %v1108, %v1188
        %v1190 = vpop.f32.mrb[0].mxu0
        %1191 = vmatprep.mubr.bf16.mxu0 0
        %1192 = vmatmul.mubr.bf16.gmra.mrb[0].mxu0 %v1121
        %v1193 = vpop.f32.mrb[0].mxu0
        %v1194 = vadd.f32 %v1108, %v1193
        %v1195 = vpop.f32.mrb[0].mxu0
        %v1196 = vpop.f32.mrb[0].mxu0
        %v1197 = vadd.f32 %v1108, %v1196
        %v1198 = vpop.f32.mrb[0].mxu0
        %1199 = vmatprep.mubr.bf16.mxu0 0
        %1200 = vmatmul.mubr.bf16.gmra.mrb[0].mxu0 %v1124
        %v1201 = vpop.f32.mrb[0].mxu0
        %v1202 = vadd.f32 %v1108, %v1201
        %v1203 = vpop.f32.mrb[0].mxu0
        %v1204 = vpop.f32.mrb[0].mxu0
        %v1205 = vadd.f32 %v1108, %v1204
        %v1206 = vpop.f32.mrb[0].mxu0
        %1207 = vmatprep.mubr.bf16.mxu0 0
        %1208 = vmatmul.mubr.bf16.gmra.mrb[0].mxu0 %v1127
        %v1209 = vpop.f32.mrb[0].mxu0
        %v1210 = vadd.f32 %v1108, %v1209
        %v1211 = vpop.f32.mrb[0].mxu0
        %v1212 = vpop.f32.mrb[0].mxu0
        %v1213 = vadd.f32 %v1108, %v1212
        %v1214 = vpop.f32.mrb[0].mxu0
        %1215 = vmatprep.mubr.bf16.mxu0 0
        %1216 = vmatmul.mubr.bf16.gmra.mrb[0].mxu0 %v1130
        %v1217 = vpop.f32.mrb[0].mxu0
        %v1218 = vadd.f32 %v1108, %v1217
        %v1219 = vpop.f32.mrb[0].mxu0
        %v1220 = vpop.f32.mrb[0].mxu0
        %v1221 = vadd.f32 %v1108, %v1220
        %v1222 = vpop.f32.mrb[0].mxu0
        %1223 = vmatprep.mubr.bf16.mxu0 0
        %1224 = vmatmul.mubr.bf16.gmra.mrb[0].mxu0 %v1133
        %v1225 = vpop.f32.mrb[0].mxu0
        %v1226 = vadd.f32 %v1108, %v1225
        %v1227 = vpop.f32.mrb[0].mxu0
        %v1228 = vpop.f32.mrb[0].mxu0
        %v1229 = vadd.f32 %v1108, %v1228
        %v1230 = vpop.f32.mrb[0].mxu0
        %1231 = vdwg.mxu0
        %v1232 = vld [vmem:[%s6] sm:$0x1]
        %1234 = vset.pattern.permute.xlu0 0
        %1235 = vperm.xlu0 %1234, %v1028
        %v1236 = vpop.permute.xlu0 %1235
        %1239 = vset.pattern.permute.xlu0 0
        %1240 = vperm.xlu0 %1239, %v1029
        %v1241 = vpop.permute.xlu0 %1240
        %1244 = vset.pattern.permute.xlu0 0
        %1245 = vperm.xlu0 %1244, %v1030
        %v1246 = vpop.permute.xlu0 %1245
        %1249 = vset.pattern.permute.xlu0 0
        %1250 = vperm.xlu0 %1249, %v1031
        %v1251 = vpop.permute.xlu0 %1250
        %1254 = vset.pattern.permute.xlu0 0
        %1255 = vperm.xlu0 %1254, %v1032
        %v1256 = vpop.permute.xlu0 %1255
        %1259 = vset.pattern.permute.xlu0 0
        %1260 = vperm.xlu0 %1259, %v1033
        %v1261 = vpop.permute.xlu0 %1260
        %1264 = vset.pattern.permute.xlu0 0
        %1265 = vperm.xlu0 %1264, %v1034
        %v1266 = vpop.permute.xlu0 %1265
        %1269 = vset.pattern.permute.xlu0 0
        %1270 = vperm.xlu0 %1269, %v1035
        %v1271 = vpop.permute.xlu0 %1270
        %1274 = vset.pattern.permute.xlu0 0
        %1275 = vperm.xlu0 %1274, %v1036
        %v1276 = vpop.permute.xlu0 %1275
        %1279 = vset.pattern.permute.xlu0 0
        %1280 = vperm.xlu0 %1279, %v1037
        %v1281 = vpop.permute.xlu0 %1280
        %1284 = vset.pattern.permute.xlu0 0
        %1285 = vperm.xlu0 %1284, %v1038
        %v1286 = vpop.permute.xlu0 %1285
        %1289 = vset.pattern.permute.xlu0 0
        %1290 = vperm.xlu0 %1289, %v1039
        %v1291 = vpop.permute.xlu0 %1290
        %1294 = vset.pattern.permute.xlu0 0
        %1295 = vperm.xlu0 %1294, %v1040
        %v1296 = vpop.permute.xlu0 %1295
        %1299 = vset.pattern.permute.xlu0 0
        %1300 = vperm.xlu0 %1299, %v1041
        %v1301 = vpop.permute.xlu0 %1300
        %1304 = vset.pattern.permute.xlu0 0
        %1305 = vperm.xlu0 %1304, %v1042
        %v1306 = vpop.permute.xlu0 %1305
        %1309 = vset.pattern.permute.xlu0 0
        %1310 = vperm.xlu0 %1309, %v1043
        %v1311 = vpop.permute.xlu0 %1310
        %v1314 = vlaneseq
        %v1315 = vshrl.u32 %v1314, 7
        %v1316 = vsub.s32 0, %v1315
        %v1317 = vrot.slane %v1232, %v1316
        %v1319 = vmul.f32 %v1236, %v1317
        %v1320 = vmul.f32 %v1241, %v1317
        %v1321 = vmul.f32 %v1246, %v1317
        %v1322 = vmul.f32 %v1251, %v1317
        %v1323 = vmul.f32 %v1256, %v1317
        %v1324 = vmul.f32 %v1261, %v1317
        %v1325 = vmul.f32 %v1266, %v1317
        %v1326 = vmul.f32 %v1271, %v1317
        %v1327 = vmul.f32 %v1276, %v1317
        %v1328 = vmul.f32 %v1281, %v1317
        %v1329 = vmul.f32 %v1286, %v1317
        %v1330 = vmul.f32 %v1291, %v1317
        %v1331 = vmul.f32 %v1296, %v1317
        %v1332 = vmul.f32 %v1301, %v1317
        %v1333 = vmul.f32 %v1306, %v1317
        %v1334 = vmul.f32 %v1311, %v1317
        %v1335 = vadd.f32 %v1170, %v1319
        %v1336 = vadd.f32 %v1173, %v1320
        %v1337 = vadd.f32 %v1178, %v1321
        %v1338 = vadd.f32 %v1181, %v1322
        %v1339 = vadd.f32 %v1186, %v1323
        %v1340 = vadd.f32 %v1189, %v1324
        %v1341 = vadd.f32 %v1194, %v1325
        %v1342 = vadd.f32 %v1197, %v1326
        %v1343 = vadd.f32 %v1202, %v1327
        %v1344 = vadd.f32 %v1205, %v1328
        %v1345 = vadd.f32 %v1210, %v1329
        %v1346 = vadd.f32 %v1213, %v1330
        %v1347 = vadd.f32 %v1218, %v1331
        %v1348 = vadd.f32 %v1221, %v1332
        %v1349 = vadd.f32 %v1226, %v1333
        %v1350 = vadd.f32 %v1229, %v1334
        %v1351 = vmax.f32 %v1335, 0.0
        %v1352 = vmax.f32 %v1336, 0.0
        %v1353 = vmax.f32 %v1337, 0.0
        %v1354 = vmax.f32 %v1338, 0.0
        %v1355 = vmax.f32 %v1339, 0.0
        %v1356 = vmax.f32 %v1340, 0.0
        %v1357 = vmax.f32 %v1341, 0.0
        %v1358 = vmax.f32 %v1342, 0.0
        %v1359 = vmax.f32 %v1343, 0.0
        %v1360 = vmax.f32 %v1344, 0.0
        %v1361 = vmax.f32 %v1345, 0.0
        %v1362 = vmax.f32 %v1346, 0.0
        %v1363 = vmax.f32 %v1347, 0.0
        %v1364 = vmax.f32 %v1348, 0.0
        %v1365 = vmax.f32 %v1349, 0.0
        %v1366 = vmax.f32 %v1350, 0.0
        %v1367 = vpack.c.bf16 %v1352, %v1351
        %v1368 = vpack.c.bf16 %v1354, %v1353
        %v1369 = vpack.c.bf16 %v1356, %v1355
        %v1370 = vpack.c.bf16 %v1358, %v1357
        %v1371 = vpack.c.bf16 %v1360, %v1359
        %v1372 = vpack.c.bf16 %v1362, %v1361
        %v1373 = vpack.c.bf16 %v1364, %v1363
        %v1374 = vpack.c.bf16 %v1366, %v1365
        %v1375 = vld [vmem:[%s7] sm:$0xff]
        %v1376 = vld [vmem:[%s7 + $0x8] sm:$0xff]
        %v1377 = vld [vmem:[%s7 + $0x10] sm:$0xff]
        %v1378 = vld [vmem:[%s7 + $0x18] sm:$0xff]
        %v1379 = vpack.c.bf16 %v1376, %v1375
        %v1380 = vpack.c.bf16 %v1378, %v1377
        %v1381 = vld [vmem:[%s8] sm:$0x1]
        %v1383 = vlaneseq
        %v1384 = vshrl.u32 %v1383, 7
        %v1385 = vsub.s32 0, %v1384
        %v1386 = vrot.slane %v1381, %v1385
        %vm1388 = vcmask 261120
        %v1390 = vsel %vm1388, %v1367, 0
        %v1393 = vsel %vm1388, %v1368, 0
        %v1396 = vsel %vm1388, %v1369, 0
        %v1399 = vsel %vm1388, %v1370, 0
        %v1402 = vsel %vm1388, %v1371, 0
        %v1405 = vsel %vm1388, %v1372, 0
        %v1408 = vsel %vm1388, %v1373, 0
        %v1411 = vsel %vm1388, %v1374, 0
        %1413 = vmatprep.subr.bf16.mxu0 0
        %1414 = vmatpush1.bf16.msra.mxu0 %v1379
        %1415 = vmatprep.subr.bf16.mxu0 0
        %1416 = vmatpush1.bf16.msra.mxu0 %v1380
        %1417 = vmatprep.subr.bf16.mxu0 0
        %1418 = vmatpush1.bf16.msra.mxu0 0
        %1419 = vmatprep.subr.bf16.mxu0 0
        %1420 = vmatpush1.bf16.msra.mxu0 0
        %1421 = vmatprep.subr.bf16.mxu0 0
        %1422 = vmatpush1.bf16.msra.mxu0 0
        %1423 = vmatprep.subr.bf16.mxu0 0
        %1424 = vmatpush1.bf16.msra.mxu0 0
        %1425 = vmatprep.subr.bf16.mxu0 0
        %1426 = vmatpush1.bf16.msra.mxu0 0
        %1427 = vmatprep.subr.bf16.mxu0 0
        %1428 = vmatpush1.bf16.msra.mxu0 0
        %1429 = vmatprep.subr.bf16.mxu0 0
        %1430 = vmatpush1.bf16.msra.mxu0 0
        %1431 = vmatprep.subr.bf16.mxu0 0
        %1432 = vmatpush1.bf16.msra.mxu0 0
        %1433 = vmatprep.subr.bf16.mxu0 0
        %1434 = vmatpush1.bf16.msra.mxu0 0
        %1435 = vmatprep.subr.bf16.mxu0 0
        %1436 = vmatpush1.bf16.msra.mxu0 0
        %1437 = vmatprep.subr.bf16.mxu0 0
        %1438 = vmatpush1.bf16.msra.mxu0 0
        %1439 = vmatprep.subr.bf16.mxu0 0
        %1440 = vmatpush1.bf16.msra.mxu0 0
        %1441 = vmatprep.subr.bf16.mxu0 0
        %1442 = vmatpush1.bf16.msra.mxu0 0
        %1443 = vmatprep.subr.bf16.mxu0 0
        %1444 = vmatpush1.bf16.msra.mxu0 0
        %1445 = vmatprep.mubr.bf16.mxu0 0
        %1446 = vmatmul.mubr.bf16.gmra.mrb[0].mxu0 %v1390
        %v1447 = vpop.f32.mrb[0].mxu0
        %v1448 = vadd.f32 %v1386, %v1447
        %v1449 = vpop.f32.mrb[0].mxu0
        %v1450 = vpop.f32.mrb[0].mxu0
        %v1451 = vadd.f32 %v1386, %v1450
        %v1452 = vpop.f32.mrb[0].mxu0
        %1453 = vmatprep.mubr.bf16.mxu0 0
        %1454 = vmatmul.mubr.bf16.gmra.mrb[0].mxu0 %v1393
        %v1455 = vpop.f32.mrb[0].mxu0
        %v1456 = vadd.f32 %v1386, %v1455
        %v1457 = vpop.f32.mrb[0].mxu0
        %v1458 = vpop.f32.mrb[0].mxu0
        %v1459 = vadd.f32 %v1386, %v1458
        %v1460 = vpop.f32.mrb[0].mxu0
        %1461 = vmatprep.mubr.bf16.mxu0 0
        %1462 = vmatmul.mubr.bf16.gmra.mrb[0].mxu0 %v1396
        %v1463 = vpop.f32.mrb[0].mxu0
        %v1464 = vadd.f32 %v1386, %v1463
        %v1465 = vpop.f32.mrb[0].mxu0
        %v1466 = vpop.f32.mrb[0].mxu0
        %v1467 = vadd.f32 %v1386, %v1466
        %v1468 = vpop.f32.mrb[0].mxu0
        %1469 = vmatprep.mubr.bf16.mxu0 0
        %1470 = vmatmul.mubr.bf16.gmra.mrb[0].mxu0 %v1399
        %v1471 = vpop.f32.mrb[0].mxu0
        %v1472 = vadd.f32 %v1386, %v1471
        %v1473 = vpop.f32.mrb[0].mxu0
        %v1474 = vpop.f32.mrb[0].mxu0
        %v1475 = vadd.f32 %v1386, %v1474
        %v1476 = vpop.f32.mrb[0].mxu0
        %1477 = vmatprep.mubr.bf16.mxu0 0
        %1478 = vmatmul.mubr.bf16.gmra.mrb[0].mxu0 %v1402
        %v1479 = vpop.f32.mrb[0].mxu0
        %v1480 = vadd.f32 %v1386, %v1479
        %v1481 = vpop.f32.mrb[0].mxu0
        %v1482 = vpop.f32.mrb[0].mxu0
        %v1483 = vadd.f32 %v1386, %v1482
        %v1484 = vpop.f32.mrb[0].mxu0
        %1485 = vmatprep.mubr.bf16.mxu0 0
        %1486 = vmatmul.mubr.bf16.gmra.mrb[0].mxu0 %v1405
        %v1487 = vpop.f32.mrb[0].mxu0
        %v1488 = vadd.f32 %v1386, %v1487
        %v1489 = vpop.f32.mrb[0].mxu0
        %v1490 = vpop.f32.mrb[0].mxu0
        %v1491 = vadd.f32 %v1386, %v1490
        %v1492 = vpop.f32.mrb[0].mxu0
        %1493 = vmatprep.mubr.bf16.mxu0 0
        %1494 = vmatmul.mubr.bf16.gmra.mrb[0].mxu0 %v1408
        %v1495 = vpop.f32.mrb[0].mxu0
        %v1496 = vadd.f32 %v1386, %v1495
        %v1497 = vpop.f32.mrb[0].mxu0
        %v1498 = vpop.f32.mrb[0].mxu0
        %v1499 = vadd.f32 %v1386, %v1498
        %v1500 = vpop.f32.mrb[0].mxu0
        %1501 = vmatprep.mubr.bf16.mxu0 0
        %1502 = vmatmul.mubr.bf16.gmra.mrb[0].mxu0 %v1411
        %v1503 = vpop.f32.mrb[0].mxu0
        %v1504 = vadd.f32 %v1386, %v1503
        %v1505 = vpop.f32.mrb[0].mxu0
        %v1506 = vpop.f32.mrb[0].mxu0
        %v1507 = vadd.f32 %v1386, %v1506
        %v1508 = vpop.f32.mrb[0].mxu0
        %1509 = vdwg.mxu0
        %v1510 = vsub.f32 %v402, %v1448
        %v1511 = vsub.f32 %v403, %v1451
        %v1512 = vsub.f32 %v404, %v1456
        %v1513 = vsub.f32 %v405, %v1459
        %v1514 = vsub.f32 %v406, %v1464
        %v1515 = vsub.f32 %v407, %v1467
        %v1516 = vsub.f32 %v408, %v1472
        %v1517 = vsub.f32 %v409, %v1475
        %v1518 = vsub.f32 %v410, %v1480
        %v1519 = vsub.f32 %v411, %v1483
        %v1520 = vsub.f32 %v412, %v1488
        %v1521 = vsub.f32 %v413, %v1491
        %v1522 = vsub.f32 %v414, %v1496
        %v1523 = vsub.f32 %v415, %v1499
        %v1524 = vsub.f32 %v416, %v1504
        %v1525 = vsub.f32 %v417, %v1507
        %s1526 = sld [smem:[#allocation2]]
        %v1527 = vmul.f32 %v1510, %v1510
        %v1528 = vmul.f32 %v1511, %v1511
        %v1529 = vmul.f32 %v1512, %v1512
        %v1530 = vmul.f32 %v1513, %v1513
        %v1531 = vmul.f32 %v1514, %v1514
        %v1532 = vmul.f32 %v1515, %v1515
        %v1533 = vmul.f32 %v1516, %v1516
        %v1534 = vmul.f32 %v1517, %v1517
        %v1535 = vmul.f32 %v1518, %v1518
        %v1536 = vmul.f32 %v1519, %v1519
        %v1537 = vmul.f32 %v1520, %v1520
        %v1538 = vmul.f32 %v1521, %v1521
        %v1539 = vmul.f32 %v1522, %v1522
        %v1540 = vmul.f32 %v1523, %v1523
        %v1541 = vmul.f32 %v1524, %v1524
        %v1542 = vmul.f32 %v1525, %v1525
        %v1543 = vsel %vm1110, %v1527, 0.0
        %v1544 = vsel %vm1110, %v1528, 0.0
        %v1545 = vadd.f32 %v1543, %v1544
        %v1546 = vsel %vm1110, %v1529, 0.0
        %v1547 = vadd.f32 %v1545, %v1546
        %v1548 = vsel %vm1110, %v1530, 0.0
        %v1549 = vadd.f32 %v1547, %v1548
        %v1550 = vsel %vm1110, %v1531, 0.0
        %v1551 = vadd.f32 %v1549, %v1550
        %v1552 = vsel %vm1110, %v1532, 0.0
        %v1553 = vadd.f32 %v1551, %v1552
        %v1554 = vsel %vm1110, %v1533, 0.0
        %v1555 = vadd.f32 %v1553, %v1554
        %v1556 = vsel %vm1110, %v1534, 0.0
        %v1557 = vadd.f32 %v1555, %v1556
        %v1558 = vsel %vm1110, %v1535, 0.0
        %v1559 = vadd.f32 %v1557, %v1558
        %v1560 = vsel %vm1110, %v1536, 0.0
        %v1561 = vadd.f32 %v1559, %v1560
        %v1562 = vsel %vm1110, %v1537, 0.0
        %v1563 = vadd.f32 %v1561, %v1562
        %v1564 = vsel %vm1110, %v1538, 0.0
        %v1565 = vadd.f32 %v1563, %v1564
        %v1566 = vsel %vm1110, %v1539, 0.0
        %v1567 = vadd.f32 %v1565, %v1566
        %v1568 = vsel %vm1110, %v1540, 0.0
        %v1569 = vadd.f32 %v1567, %v1568
        %v1570 = vsel %vm1110, %v1541, 0.0
        %v1571 = vadd.f32 %v1569, %v1570
        %v1572 = vsel %vm1110, %v1542, 0.0
        %v1573 = vadd.f32 %v1571, %v1572
        %1574 = vadd.xlane.f32.xlu0 %v1573
        %v1575 = vpop.xlane.xlu0 %1574
        %v1576 = vrot.slane %v1575, 4
        %v1577 = vadd.f32 %v1575, %v1576
        %v1578 = vrot.slane %v1577, 2
        %v1579 = vadd.f32 %v1577, %v1578
        %v1580 = vrot.slane %v1579, 1
        %v1581 = vadd.f32 %v1579, %v1580
        %s1582 = vtos %v1581
        %s1583 = sadd.f32 %s1526, %s1582
        %s1584 = scalar_lea.smem [#allocation2], 0
        %1585 = sst [smem:[%s1584]] %s1583
        %s1586 = sld [smem:[#allocation2 + $0x1]]
        %v1587 = vsel %vm1110, %v402, 0.0
        %v1588 = vsel %vm1110, %v403, 0.0
        %v1589 = vadd.f32 %v1587, %v1588
        %v1590 = vsel %vm1110, %v404, 0.0
        %v1591 = vadd.f32 %v1589, %v1590
        %v1592 = vsel %vm1110, %v405, 0.0
        %v1593 = vadd.f32 %v1591, %v1592
        %v1594 = vsel %vm1110, %v406, 0.0
        %v1595 = vadd.f32 %v1593, %v1594
        %v1596 = vsel %vm1110, %v407, 0.0
        %v1597 = vadd.f32 %v1595, %v1596
        %v1598 = vsel %vm1110, %v408, 0.0
        %v1599 = vadd.f32 %v1597, %v1598
        %v1600 = vsel %vm1110, %v409, 0.0
        %v1601 = vadd.f32 %v1599, %v1600
        %v1602 = vsel %vm1110, %v410, 0.0
        %v1603 = vadd.f32 %v1601, %v1602
        %v1604 = vsel %vm1110, %v411, 0.0
        %v1605 = vadd.f32 %v1603, %v1604
        %v1606 = vsel %vm1110, %v412, 0.0
        %v1607 = vadd.f32 %v1605, %v1606
        %v1608 = vsel %vm1110, %v413, 0.0
        %v1609 = vadd.f32 %v1607, %v1608
        %v1610 = vsel %vm1110, %v414, 0.0
        %v1611 = vadd.f32 %v1609, %v1610
        %v1612 = vsel %vm1110, %v415, 0.0
        %v1613 = vadd.f32 %v1611, %v1612
        %v1614 = vsel %vm1110, %v416, 0.0
        %v1615 = vadd.f32 %v1613, %v1614
        %v1616 = vsel %vm1110, %v417, 0.0
        %v1617 = vadd.f32 %v1615, %v1616
        %1618 = vadd.xlane.f32.xlu0 %v1617
        %v1619 = vpop.xlane.xlu0 %1618
        %v1620 = vrot.slane %v1619, 4
        %v1621 = vadd.f32 %v1619, %v1620
        %v1622 = vrot.slane %v1621, 2
        %v1623 = vadd.f32 %v1621, %v1622
        %v1624 = vrot.slane %v1623, 1
        %v1625 = vadd.f32 %v1623, %v1624
        %s1626 = vtos %v1625
        %s1627 = sadd.f32 %s1586, %s1626
        %s1628 = scalar_lea.smem [#allocation2], 1
        %1629 = sst [smem:[%s1628]] %s1627
        %s1630 = sld [smem:[#allocation2 + $0x2]]
        %v1631 = vmul.f32 %v402, %v402
        %v1632 = vmul.f32 %v403, %v403
        %v1633 = vmul.f32 %v404, %v404
        %v1634 = vmul.f32 %v405, %v405
        %v1635 = vmul.f32 %v406, %v406
        %v1636 = vmul.f32 %v407, %v407
        %v1637 = vmul.f32 %v408, %v408
        %v1638 = vmul.f32 %v409, %v409
        %v1639 = vmul.f32 %v410, %v410
        %v1640 = vmul.f32 %v411, %v411
        %v1641 = vmul.f32 %v412, %v412
        %v1642 = vmul.f32 %v413, %v413
        %v1643 = vmul.f32 %v414, %v414
        %v1644 = vmul.f32 %v415, %v415
        %v1645 = vmul.f32 %v416, %v416
        %v1646 = vmul.f32 %v417, %v417
        %v1647 = vsel %vm1110, %v1631, 0.0
        %v1648 = vsel %vm1110, %v1632, 0.0
        %v1649 = vadd.f32 %v1647, %v1648
        %v1650 = vsel %vm1110, %v1633, 0.0
        %v1651 = vadd.f32 %v1649, %v1650
        %v1652 = vsel %vm1110, %v1634, 0.0
        %v1653 = vadd.f32 %v1651, %v1652
        %v1654 = vsel %vm1110, %v1635, 0.0
        %v1655 = vadd.f32 %v1653, %v1654
        %v1656 = vsel %vm1110, %v1636, 0.0
        %v1657 = vadd.f32 %v1655, %v1656
        %v1658 = vsel %vm1110, %v1637, 0.0
        %v1659 = vadd.f32 %v1657, %v1658
        %v1660 = vsel %vm1110, %v1638, 0.0
        %v1661 = vadd.f32 %v1659, %v1660
        %v1662 = vsel %vm1110, %v1639, 0.0
        %v1663 = vadd.f32 %v1661, %v1662
        %v1664 = vsel %vm1110, %v1640, 0.0
        %v1665 = vadd.f32 %v1663, %v1664
        %v1666 = vsel %vm1110, %v1641, 0.0
        %v1667 = vadd.f32 %v1665, %v1666
        %v1668 = vsel %vm1110, %v1642, 0.0
        %v1669 = vadd.f32 %v1667, %v1668
        %v1670 = vsel %vm1110, %v1643, 0.0
        %v1671 = vadd.f32 %v1669, %v1670
        %v1672 = vsel %vm1110, %v1644, 0.0
        %v1673 = vadd.f32 %v1671, %v1672
        %v1674 = vsel %vm1110, %v1645, 0.0
        %v1675 = vadd.f32 %v1673, %v1674
        %v1676 = vsel %vm1110, %v1646, 0.0
        %v1677 = vadd.f32 %v1675, %v1676
        %1678 = vadd.xlane.f32.xlu0 %v1677
        %v1679 = vpop.xlane.xlu0 %1678
        %v1680 = vrot.slane %v1679, 4
        %v1681 = vadd.f32 %v1679, %v1680
        %v1682 = vrot.slane %v1681, 2
        %v1683 = vadd.f32 %v1681, %v1682
        %v1684 = vrot.slane %v1683, 1
        %v1685 = vadd.f32 %v1683, %v1684
        %s1686 = vtos %v1685
        %s1687 = sadd.f32 %s1630, %s1686
        %s1688 = scalar_lea.smem [#allocation2], 2
        %1689 = sst [smem:[%s1688]] %s1687
        %s1690 = sld [smem:[#allocation2 + $0x3]]
        %v1691 = vsel %vm1110, %v1448, 0.0
        %v1692 = vsel %vm1110, %v1451, 0.0
        %v1693 = vadd.f32 %v1691, %v1692
        %v1694 = vsel %vm1110, %v1456, 0.0
        %v1695 = vadd.f32 %v1693, %v1694
        %v1696 = vsel %vm1110, %v1459, 0.0
        %v1697 = vadd.f32 %v1695, %v1696
        %v1698 = vsel %vm1110, %v1464, 0.0
        %v1699 = vadd.f32 %v1697, %v1698
        %v1700 = vsel %vm1110, %v1467, 0.0
        %v1701 = vadd.f32 %v1699, %v1700
        %v1702 = vsel %vm1110, %v1472, 0.0
        %v1703 = vadd.f32 %v1701, %v1702
        %v1704 = vsel %vm1110, %v1475, 0.0
        %v1705 = vadd.f32 %v1703, %v1704
        %v1706 = vsel %vm1110, %v1480, 0.0
        %v1707 = vadd.f32 %v1705, %v1706
        %v1708 = vsel %vm1110, %v1483, 0.0
        %v1709 = vadd.f32 %v1707, %v1708
        %v1710 = vsel %vm1110, %v1488, 0.0
        %v1711 = vadd.f32 %v1709, %v1710
        %v1712 = vsel %vm1110, %v1491, 0.0
        %v1713 = vadd.f32 %v1711, %v1712
        %v1714 = vsel %vm1110, %v1496, 0.0
        %v1715 = vadd.f32 %v1713, %v1714
        %v1716 = vsel %vm1110, %v1499, 0.0
        %v1717 = vadd.f32 %v1715, %v1716
        %v1718 = vsel %vm1110, %v1504, 0.0
        %v1719 = vadd.f32 %v1717, %v1718
        %v1720 = vsel %vm1110, %v1507, 0.0
        %v1721 = vadd.f32 %v1719, %v1720
        %1722 = vadd.xlane.f32.xlu0 %v1721
        %v1723 = vpop.xlane.xlu0 %1722
        %v1724 = vrot.slane %v1723, 4
        %v1725 = vadd.f32 %v1723, %v1724
        %v1726 = vrot.slane %v1725, 2
        %v1727 = vadd.f32 %v1725, %v1726
        %v1728 = vrot.slane %v1727, 1
        %v1729 = vadd.f32 %v1727, %v1728
        %s1730 = vtos %v1729
        %s1731 = sadd.f32 %s1690, %s1730
        %s1732 = scalar_lea.smem [#allocation2], 3
        %1733 = sst [smem:[%s1732]] %s1731
        %s1734 = sld [smem:[#allocation2 + $0x4]]
        %v1735 = vmul.f32 %v1448, %v1448
        %v1736 = vmul.f32 %v1451, %v1451
        %v1737 = vmul.f32 %v1456, %v1456
        %v1738 = vmul.f32 %v1459, %v1459
        %v1739 = vmul.f32 %v1464, %v1464
        %v1740 = vmul.f32 %v1467, %v1467
        %v1741 = vmul.f32 %v1472, %v1472
        %v1742 = vmul.f32 %v1475, %v1475
        %v1743 = vmul.f32 %v1480, %v1480
        %v1744 = vmul.f32 %v1483, %v1483
        %v1745 = vmul.f32 %v1488, %v1488
        %v1746 = vmul.f32 %v1491, %v1491
        %v1747 = vmul.f32 %v1496, %v1496
        %v1748 = vmul.f32 %v1499, %v1499
        %v1749 = vmul.f32 %v1504, %v1504
        %v1750 = vmul.f32 %v1507, %v1507
        %v1751 = vsel %vm1110, %v1735, 0.0
        %v1752 = vsel %vm1110, %v1736, 0.0
        %v1753 = vadd.f32 %v1751, %v1752
        %v1754 = vsel %vm1110, %v1737, 0.0
        %v1755 = vadd.f32 %v1753, %v1754
        %v1756 = vsel %vm1110, %v1738, 0.0
        %v1757 = vadd.f32 %v1755, %v1756
        %v1758 = vsel %vm1110, %v1739, 0.0
        %v1759 = vadd.f32 %v1757, %v1758
        %v1760 = vsel %vm1110, %v1740, 0.0
        %v1761 = vadd.f32 %v1759, %v1760
        %v1762 = vsel %vm1110, %v1741, 0.0
        %v1763 = vadd.f32 %v1761, %v1762
        %v1764 = vsel %vm1110, %v1742, 0.0
        %v1765 = vadd.f32 %v1763, %v1764
        %v1766 = vsel %vm1110, %v1743, 0.0
        %v1767 = vadd.f32 %v1765, %v1766
        %v1768 = vsel %vm1110, %v1744, 0.0
        %v1769 = vadd.f32 %v1767, %v1768
        %v1770 = vsel %vm1110, %v1745, 0.0
        %v1771 = vadd.f32 %v1769, %v1770
        %v1772 = vsel %vm1110, %v1746, 0.0
        %v1773 = vadd.f32 %v1771, %v1772
        %v1774 = vsel %vm1110, %v1747, 0.0
        %v1775 = vadd.f32 %v1773, %v1774
        %v1776 = vsel %vm1110, %v1748, 0.0
        %v1777 = vadd.f32 %v1775, %v1776
        %v1778 = vsel %vm1110, %v1749, 0.0
        %v1779 = vadd.f32 %v1777, %v1778
        %v1780 = vsel %vm1110, %v1750, 0.0
        %v1781 = vadd.f32 %v1779, %v1780
        %1782 = vadd.xlane.f32.xlu0 %v1781
        %v1783 = vpop.xlane.xlu0 %1782
        %v1784 = vrot.slane %v1783, 4
        %v1785 = vadd.f32 %v1783, %v1784
        %v1786 = vrot.slane %v1785, 2
        %v1787 = vadd.f32 %v1785, %v1786
        %v1788 = vrot.slane %v1787, 1
        %v1789 = vadd.f32 %v1787, %v1788
        %s1790 = vtos %v1789
        %s1791 = sadd.f32 %s1734, %s1790
        %s1792 = scalar_lea.smem [#allocation2], 4
        %1793 = sst [smem:[%s1792]] %s1791
        %p1794 = scmp.eq.s32.totalorder %s21, 1
        // Predicated region
        $region61: #{ddpm_forward.1} parent=55 // pred_check
          %p1795 = pneg %p1794
        $region62: #{ddpm_forward.1} parent=55 // pred_check_branch
          %1797 = sbr.rel (%p1795) target = $region64
        $region63: #{ddpm_forward.1} parent=55 // pred_region
          %s1798 = sld [smem:[#allocation2]]
          %s1799 = smul.f32 %s1798, 0.00024414063
          %1800 = sst [smem:[%s1584]] %s1799
        $region64: #{ddpm_forward.1} parent=55 // pred_fallthru
          _
        // Predicated region
        $region65: #{ddpm_forward.1} parent=55 // pred_check
          %p1801 = pneg %p238
        $region66: #{ddpm_forward.1} parent=55 // pred_check_branch
          %1803 = sbr.rel (%p1801) target = $region68
        $region67: #{ddpm_forward.1} parent=55 // pred_region
          %s1805 = ssub.s32 16, 16
          %1806 = vsyncadd [#allocation3], %s1805
          %s1808 = sshll.u32 %s9, 4
          %s1809 = int_to_ptr.vmem [resolvable:$true] %s1808
          %1811 = dma.smem_to_vmem [#allocation2], 16, %s1809, [#allocation3]
        $region68: #{ddpm_forward.1} parent=55 // pred_fallthru
          _
        // Predicated region
        $region69: #{ddpm_forward.1} parent=55 // pred_check
          %p1812 = pneg %p238
        $region70: #{ddpm_forward.1} parent=55 // pred_check_branch
          %1814 = sbr.rel (%p1812) target = $region72
        $region71: #{ddpm_forward.1} parent=55 // pred_region
          %1815 = dma.done [#allocation3], 16
        $region72: #{ddpm_forward.1} parent=55 // pred_fallthru
          _
        %1816 = sfence
      $region56: #{ddpm_forward.1} parent=5 // pred_fallthru
        _
      %p1817 = scmp.le.s32.totalorder 2, %s16
      // Predicated region
      $region73: #{ddpm_forward.1} parent=5 // pred_check
        %p1818 = pneg %p1817
      $region74: #{ddpm_forward.1} parent=5 // pred_check_branch
        %1820 = sbr.rel (%p1818) target = $region76
      $region75: #{ddpm_forward.1} parent=5 // pred_region
        %s1821 = ssub.s32 %s16, 2
      $region76: #{ddpm_forward.1} parent=5 // pred_fallthru
        _
    $region6: #{ddpm_forward.1} parent=1 // loop_footer
      %s20 = sadd.s32 1, %s16
    $region7: #{ddpm_forward.1} parent=1 // loop_footer_branch
      %15 = sbr.rel target = $region3
    $region8: #{ddpm_forward.1} parent=1 // loop_exit
      _
    %1822 = vsyncpa [#allocation3], 1
    %s1823 = scalar_lea.sflag [#allocation3], 1
    %1824 = vsyncpa %s1823, 1

</llo_original>
